<compile_context>
chip_gen: v7x
topology: tpu7x:2x2x1
jax: 0.10.0
libtpu: 0.0.40
codegen_flags: <defaults>
</compile_context>

<pallas_src>
import numpy as np
import jax
import jax.numpy as jnp
from jax.experimental import pallas as pl
from jax.experimental.pallas import tpu as pltpu


def _round_up(a, m):
    return ((a + m - 1) // m) * m


def _build_operators(L, P, P_pad, w):
    """Host-side (numpy) precompute of the pooling / conv operators.

    Returns:
      op : (L, (1+W)*P_pad) f32
           block 0     : truncation + adaptive-avg channels with Conv1d taps folded
           blocks 1..W : one-hot gather; block s, lane p holds x[start[p]+min(s,size[p]-1)]
                         (duplicates for out-of-window slots => max over blocks is exact)
      wm : (P_pad, P_pad) f32 tridiagonal conv operator for the max channel
      W  : number of gather blocks = max adaptive window length
    """
    w = np.asarray(w, dtype=np.float64)
    i = np.arange(P)
    start = (i * L) // P                       # floor(p*L/P)
    end = ((i + 1) * L + P - 1) // P           # ceil((p+1)*L/P)
    sizes = end - start
    W = int(sizes.max())

    j = np.arange(L)
    mask = (j[None, :] >= start[:, None]) & (j[None, :] < end[:, None])   # (P, L)
    counts = mask.sum(axis=1).astype(np.float64)

    A = mask.T.astype(np.float64) / counts[None, :]     # (L, P) adaptive-avg operator
    Sl = np.eye(L, P, dtype=np.float64)                 # (L, P) truncation operator

    def fold(ch_op, wc):
        # Fold Conv1d(kernel=3, padding=1) taps along the output axis:
        # column p -> wc[0]*col[p-1] + wc[1]*col[p] + wc[2]*col[p+1].
        out = wc[1] * ch_op
        out[:, 1:] += wc[0] * ch_op[:, :-1]
        out[:, :-1] += wc[2] * ch_op[:, 1:]
        return out

    M = fold(Sl, w[0]) + fold(A, w[1])                  # (L, P)

    # One-hot gather for the adaptive max pool: W lane-dense blocks of width P_pad.
    G = np.zeros((L, W, P_pad), dtype=np.float64)
    for p in range(P):
        for s in range(W):
            G[start[p] + min(s, sizes[p] - 1), s, p] = 1.0

    op = np.zeros((L, (1 + W) * P_pad), dtype=np.float64)
    op[:, :P] = M
    op[:, P_pad:] = G.reshape(L, W * P_pad)

    # Tridiagonal conv operator for the max channel: out[p] = sum_q mx[q] * wm[q, p].
    wm = np.zeros((P_pad, P_pad), dtype=np.float64)
    for p in range(P):
        wm[p, p] = w[2, 1]
        if p - 1 >= 0:
            wm[p - 1, p] = w[2, 0]
        if p + 1 < P:
            wm[p + 1, p] = w[2, 2]

    return jnp.asarray(op, jnp.float32), jnp.asarray(wm, jnp.float32), W


def _make_kernel(P_pad, W):
    HIGHEST = jax.lax.Precision.HIGHEST   # keep f32 accuracy on the MXU

    def kernel(op_ref, wm_ref, b_ref, x_ref, o_ref):
        x = x_ref[...]                                        # (Bt, L) f32
        # One MXU matmul: conv-folded linear channels + max-window gather.
        g = jnp.dot(x, op_ref[...],
                    preferred_element_type=jnp.float32,
                    precision=HIGHEST)                        # (Bt, (1+W)*P_pad)
        acc = g[:, :P_pad]
        # Adaptive max pool = elementwise max over W lane-dense gather blocks.
        mx = g[:, P_pad:2 * P_pad]
        for s in range(1, W):
            mx = jnp.maximum(mx, g[:, (1 + s) * P_pad:(2 + s) * P_pad])
        # Conv taps on the max channel as a tiny tridiagonal matmul (MXU slack).
        acc = acc + jnp.dot(mx, wm_ref[...],
                            preferred_element_type=jnp.float32,
                            precision=HIGHEST)
        o_ref[...] = (acc + b_ref[0]).astype(o_ref.dtype)

    return kernel


def alignment_layer(x, w, b, num_points, *, block_b=None):
    """x: (B, L) f32, w: (3, 3) f32 (Conv1d weight squeezed), b: (1,) f32."""
    x = jnp.asarray(x, jnp.float32)
    b = jnp.asarray(b, jnp.float32).reshape(1)
    B, L = x.shape
    P = int(num_points)
    assert L >= P, "forward requires L >= num_points (x[:, :P] slice)"

    P_pad = _round_up(P, 128)                       # lane-dense output stores
    op, wm, W = _build_operators(L, P, P_pad, np.asarray(w))
    Np = (1 + W) * P_pad

    # --- VMEM budget (generation aware: ~128 MiB v5e/v6e, 64 MiB v7x) ---
    try:
        vmem_cap = int(pltpu.get_tpu_info().vmem_capacity_bytes)
    except Exception:
        vmem_cap = 64 << 20
    budget = (vmem_cap * 3) // 4                    # headroom for compiler scratch

    def vmem_need(bt):
        const = 8 * (L * Np + P_pad * P_pad)        # f32 operators, double-buffered
        stream = 8 * bt * (L + P_pad)               # f32 x / out tiles, double-buffered
        inter = 4 * bt * Np                         # matmul result g
        return const + stream + inter

    # --- batch tile: sized from B, >= 2 grid steps when possible (megacore) ---
    if block_b is None:
        block_b = 512 if budget >= (80 << 20) else 256
    Bt = min(block_b, _round_up(B, 8))
    if B >= 16 and pl.cdiv(B, Bt) < 2:
        Bt = _round_up(pl.cdiv(B, 2), 8)
    while Bt > 8 and vmem_need(Bt) > budget:
        Bt = _round_up(Bt // 2, 8)
    Bpad = pl.cdiv(B, Bt) * Bt
    xp = jnp.pad(x, ((0, Bpad - B), (0, 0))) if Bpad != B else x

    vmem_limit = int(min(max(vmem_need(Bt) + (8 << 20), 32 << 20), budget))

    kernel = _make_kernel(P_pad, W)

    out = pl.pallas_call(
        kernel,
        out_shape=jax.ShapeDtypeStruct((Bpad, P_pad), jnp.float32),
        grid=(Bpad // Bt,),
        in_specs=[
            pl.BlockSpec((L, Np), lambda i: (0, 0)),            # folded operator (constant)
            pl.BlockSpec((P_pad, P_pad), lambda i: (0, 0)),     # max-channel conv (constant)
            pl.BlockSpec(memory_space=pltpu.MemorySpace.SMEM),  # bias scalar
            pl.BlockSpec((Bt, L), lambda i: (i, 0)),            # x, tiled over batch
        ],
        out_specs=pl.BlockSpec((Bt, P_pad), lambda i: (i, 0)),
        compiler_params=pltpu.CompilerParams(
            dimension_semantics=("parallel",),
            vmem_limit_bytes=vmem_limit,
        ),
    )(op, wm, b, xp)

    return out[:B, :P]


def _reference(x, w, b, P):
    """Pure-JAX reference matching the PyTorch forward."""
    B, L = x.shape
    i = jnp.arange(P)
    start = (i * L) // P
    end = ((i + 1) * L + P - 1) // P
    j = jnp.arange(L)
    mask = (j[None, :] >= start[:, None]) & (j[None, :] < end[:, None])   # (P, L)
    counts = mask.sum(axis=1).astype(jnp.float32)
    avg = (x[:, None, :] * mask[None]).sum(-1) / counts[None, :]
    mx = jnp.where(mask[None], x[:, None, :], -jnp.inf).max(-1)
    sl = x[:, :P]
    stacked = jnp.stack([sl, avg, mx], axis=1)                            # (B, 3, P)
    padded = jnp.pad(stacked, ((0, 0), (0, 0), (1, 1)))
    out = jnp.full((B, P), b[0], jnp.float32)
    for c in range(3):
        for k in range(3):
            out = out + w[c, k] * padded[:, c, k:k + P]
    return out


if __name__ == "__main__":
    key = jax.random.PRNGKey(0)
    kx, kw, kb, kx2 = jax.random.split(key, 4)

    # Conv1d(3, 1, 3) parameters: weight (1, 3, 3) -> squeezed to (3, 3), bias (1,)
    w = (jax.random.uniform(kw, (3, 3), dtype=jnp.float32) - 0.5) * (2.0 / 3.0)
    b = (jax.random.uniform(kb, (1,), dtype=jnp.float32) - 0.5) * (2.0 / 3.0)

    # Case 1: small shape, non-divisible adaptive windows, single grid step.
    B1, L1, P1 = 4, 40, 16
    x1 = jax.random.normal(kx, (B1, L1), dtype=jnp.float32)
    out1 = jax.block_until_ready(alignment_layer(x1, w, b, P1))
    ref1 = _reference(x1, w, b, P1)
    assert out1.shape == (B1, P1)
    assert jnp.allclose(out1, ref1, atol=2e-4, rtol=2e-4), "case 1 mismatch"

    # Case 2: exercises the batch grid (tiling + padding) and many gather blocks.
    B2, L2, P2 = 20, 300, 16
    x2 = jax.random.normal(kx2, (B2, L2), dtype=jnp.float32)
    out2 = jax.block_until_ready(alignment_layer(x2, w, b, P2, block_b=8))
    ref2 = _reference(x2, w, b, P2)
    assert out2.shape == (B2, P2)
    assert jnp.allclose(out2, ref2, atol=2e-4, rtol=2e-4), "case 2 mismatch"

    print("KERNEL_OK")
</pallas_src>

<mosaic_0001>
module attributes {stable_mosaic.version = 11 : i64} {
  func.func @kernel(%arg0: i32, %arg1: memref<40x512xf32, #tpu.memory_space<vmem>>, %arg2: memref<128x128xf32, #tpu.memory_space<vmem>>, %arg3: memref<1xf32, #tpu.memory_space<smem>>, %arg4: memref<8x40xf32, #tpu.memory_space<vmem>>, %arg5: memref<8x128xf32, #tpu.memory_space<vmem>>) attributes {dimension_semantics = [#tpu.dimension_semantics<parallel>], iteration_bounds = array<i64: 1>, scalar_prefetch = 0 : i64, scratch_operands = 0 : i64, tpu.core_type = #tpu.core_type<tc>, window_params = [{pipeline_mode = #tpu.pipeline_mode<synchronous>, transform_indices = @transform_0, window_bounds = array<i64: 40, 512>}, {pipeline_mode = #tpu.pipeline_mode<synchronous>, transform_indices = @transform_1, window_bounds = array<i64: 128, 128>}, {transform_indices = @transform_2, window_bounds = array<i64: 1>}, {transform_indices = @transform_3, window_bounds = array<i64: 8, 40>}, {transform_indices = @transform_4, window_bounds = array<i64: 8, 128>}]} {
    %c0 = arith.constant 0 : index
    %c0_0 = arith.constant 0 : index
    %0 = vector.load %arg4[%c0, %c0_0] : memref<8x40xf32, #tpu.memory_space<vmem>>, vector<8x40xf32>
    %c0_1 = arith.constant 0 : index
    %c0_2 = arith.constant 0 : index
    %1 = vector.load %arg1[%c0_1, %c0_2] : memref<40x512xf32, #tpu.memory_space<vmem>>, vector<40x512xf32>
    %cst = arith.constant dense<0.000000e+00> : vector<8x512xf32>
    %2 = tpu.matmul %0, %1, %cst {dimension_numbers = #tpu.dot_dimension_numbers<[1], [0], [0], [1], [0, 0, 1, 1], [], []>, precision = #tpu.contract_precision<fp32>} : vector<8x40xf32>, vector<40x512xf32>, vector<8x512xf32> -> vector<8x512xf32>
    %3 = vector.extract_strided_slice %2 {offsets = [0, 0], sizes = [8, 128], strides = [1, 1]} : vector<8x512xf32> to vector<8x128xf32>
    %4 = vector.extract_strided_slice %2 {offsets = [0, 128], sizes = [8, 128], strides = [1, 1]} : vector<8x512xf32> to vector<8x128xf32>
    %5 = vector.extract_strided_slice %2 {offsets = [0, 256], sizes = [8, 128], strides = [1, 1]} : vector<8x512xf32> to vector<8x128xf32>
    %6 = arith.maximumf %4, %5 : vector<8x128xf32>
    %7 = vector.extract_strided_slice %2 {offsets = [0, 384], sizes = [8, 128], strides = [1, 1]} : vector<8x512xf32> to vector<8x128xf32>
    %8 = arith.maximumf %6, %7 : vector<8x128xf32>
    %c0_3 = arith.constant 0 : index
    %c0_4 = arith.constant 0 : index
    %9 = vector.load %arg2[%c0_3, %c0_4] : memref<128x128xf32, #tpu.memory_space<vmem>>, vector<128x128xf32>
    %cst_5 = arith.constant dense<0.000000e+00> : vector<8x128xf32>
    %10 = tpu.matmul %8, %9, %cst_5 {dimension_numbers = #tpu.dot_dimension_numbers<[1], [0], [0], [1], [0, 0, 1, 1], [], []>, precision = #tpu.contract_precision<fp32>} : vector<8x128xf32>, vector<128x128xf32>, vector<8x128xf32> -> vector<8x128xf32>
    %11 = arith.addf %3, %10 : vector<8x128xf32>
    %c0_6 = arith.constant 0 : index
    %12 = memref.load %arg3[%c0_6] : memref<1xf32, #tpu.memory_space<smem>>
    %13 = vector.broadcast %12 : f32 to vector<8x128xf32>
    %14 = arith.addf %11, %13 : vector<8x128xf32>
    %c0_7 = arith.constant 0 : index
    %c0_8 = arith.constant 0 : index
    %15 = vector.load %arg5[%c0_7, %c0_8] : memref<8x128xf32, #tpu.memory_space<vmem>>, vector<8x128xf32>
    tpu.vector_store %arg5[%c0_7, %c0_8], %14 {strides = array<i32>} : memref<8x128xf32, #tpu.memory_space<vmem>>, vector<8x128xf32>,
    return
  }
  func.func @transform_0(%arg0: i32) -> (i32, i32) {
    %c0_i32 = arith.constant 0 : i32
    %c0_i32_0 = arith.constant 0 : i32
    %c0_i32_1 = arith.constant 0 : i32
    return %c0_i32, %c0_i32_0 : i32, i32
  }
  func.func @transform_1(%arg0: i32) -> (i32, i32) {
    %c0_i32 = arith.constant 0 : i32
    %c0_i32_0 = arith.constant 0 : i32
    %c0_i32_1 = arith.constant 0 : i32
    return %c0_i32, %c0_i32_0 : i32, i32
  }
  func.func @transform_2(%arg0: i32) -> i32 {
    %c0_i32 = arith.constant 0 : i32
    %c0_i32_0 = arith.constant 0 : i32
    return %c0_i32 : i32
  }
  func.func @transform_3(%arg0: i32) -> (i32, i32) {
    %c0_i32 = arith.constant 0 : i32
    %c0_i32_0 = arith.constant 0 : i32
    return %arg0, %c0_i32 : i32, i32
  }
  func.func @transform_4(%arg0: i32) -> (i32, i32) {
    %c0_i32 = arith.constant 0 : i32
    %c0_i32_0 = arith.constant 0 : i32
    return %arg0, %c0_i32 : i32, i32
  }
}

</mosaic_0001>

<llo_original>
// kernel: tpu_custom_call.1
$region0: #{tpu_custom_call.1}
  #allocation0 [shape = 'u32[]', space=smem, size = 0x4, offset = 0x4, fixed_abs, tag = 'smem constant byte address 0x4 - core index']
  #allocation1 [shape = 'u32[144,128]{1,0:T(1,128)}', space=vmem, size = 0x12000, scoped, tag = 'internal scratch']
  #allocation2 [shape = 'f32[1]{0:T(128)S(6)}', space=smem, size = 0x200, scoped, tag = 'scoped memory for tpu_custom_call.1']
  %s0 = inlined_call_operand.hbm [shape: f32[40,512], index: 0, kind: input, shape index: {}]
  %s1 = inlined_call_operand.hbm [shape: f32[128,128], index: 1, kind: input, shape index: {}]
  %s2 = inlined_call_operand.<no memory space> [shape: f32[1], index: 2, kind: input, shape index: {}]
  %s3 = inlined_call_operand.vmem [shape: f32[8,40], index: 3, kind: input, shape index: {}]
  %s4 = inlined_call_operand.hbm [shape: f32[8,128], index: 4, kind: output, shape index: {}]
  %s5 = sld [smem:[#allocation0]]
  $region34: #{tpu_custom_call.1} parent=0
    _
  %s7 = ssub.s32 1, %s5
  %s8 = scalar_select 0, %s7, %s5
  %9 = sst [smem:[#allocation2]] %s2
  $region1: #{tpu_custom_call.1} parent=0
    #allocation3 [shape = 'u8[81920]{0}', space=vmem, size = 0x14000, scoped, tag = 'input window, operand 0, single buffered']
    #allocation4 [shape = 's32[1]{0}', space=sflag, size = 0x4, scoped, tag = 'scoped memory for tpu_custom_call.1']
    #allocation5 [shape = 's32[1]{0}', space=sflag, size = 0x4, scoped, tag = 'scoped memory for tpu_custom_call.1']
    #allocation6 [shape = 'u8[65536]{0}', space=vmem, size = 0x10000, scoped, tag = 'input window, operand 1, single buffered']
    #allocation7 [shape = 's32[1]{0}', space=sflag, size = 0x4, scoped, tag = 'scoped memory for tpu_custom_call.1']
    #allocation8 [shape = 'u8[4096]{0}', space=vmem, size = 0x1000, scoped, tag = 'output window, operand 0, single buffered']
    %10 = vsyncpa [#allocation4], 0
    %11 = vsyncpa [#allocation7], 0
    %12 = vsyncpa [#allocation5], 0
    // Predicated region
    $region2: #{tpu_custom_call.1} parent=1 // pred_check
      _
    $region3: #{tpu_custom_call.1} parent=1 // pred_check_branch
      %14 = sbr.rel (0) target = $region5
    $region4: #{tpu_custom_call.1} parent=1 // pred_region
      %s16 = ssub.s32 2560, 2560
      %17 = vsyncadd [#allocation4], %s16
      %s18 = sshll.u32 [#allocation3], 4
      %s19 = int_to_ptr.vmem [resolvable:$true] %s18
      %24 = dma.hbm_to_vmem [thread:$0]  %s0, 2560, %s19, [#allocation4], 512, 512, 32
    $region5: #{tpu_custom_call.1} parent=1 // pred_fallthru
      _
    // Predicated region
    $region6: #{tpu_custom_call.1} parent=1 // pred_check
      _
    $region7: #{tpu_custom_call.1} parent=1 // pred_check_branch
      %26 = sbr.rel (0) target = $region9
    $region8: #{tpu_custom_call.1} parent=1 // pred_region
      %s28 = ssub.s32 2048, 2048
      %29 = vsyncadd [#allocation7], %s28
      %s30 = sshll.u32 [#allocation6], 4
      %s31 = int_to_ptr.vmem [resolvable:$true] %s30
      %36 = dma.hbm_to_vmem [thread:$0]  %s1, 2048, %s31, [#allocation7], 128, 128, 8
    $region9: #{tpu_custom_call.1} parent=1 // pred_fallthru
      _
    // Predicated region
    $region10: #{tpu_custom_call.1} parent=1 // pred_check
      _
    $region11: #{tpu_custom_call.1} parent=1 // pred_check_branch
      %38 = sbr.rel (0) target = $region13
    $region12: #{tpu_custom_call.1} parent=1 // pred_region
      _
    $region13: #{tpu_custom_call.1} parent=1 // pred_fallthru
      _
    // Predicated region
    $region14: #{tpu_custom_call.1} parent=1 // pred_check
      _
    $region15: #{tpu_custom_call.1} parent=1 // pred_check_branch
      %40 = sbr.rel (0) target = $region17
    $region16: #{tpu_custom_call.1} parent=1 // pred_region
      _
    $region17: #{tpu_custom_call.1} parent=1 // pred_fallthru
      _
    // Predicated region
    $region18: #{tpu_custom_call.1} parent=1 // pred_check
      _
    $region19: #{tpu_custom_call.1} parent=1 // pred_check_branch
      %42 = sbr.rel (0) target = $region21
    $region20: #{tpu_custom_call.1} parent=1 // pred_region
      %43 = dma.done [#allocation4], 2560
    $region21: #{tpu_custom_call.1} parent=1 // pred_fallthru
      _
    // Predicated region
    $region22: #{tpu_custom_call.1} parent=1 // pred_check
      _
    $region23: #{tpu_custom_call.1} parent=1 // pred_check_branch
      %45 = sbr.rel (0) target = $region25
    $region24: #{tpu_custom_call.1} parent=1 // pred_region
      %46 = dma.done [#allocation7], 2048
    $region25: #{tpu_custom_call.1} parent=1 // pred_fallthru
      _
    %v47 = vld [vmem:[%s3] sm:$0xff]
    %v48 = vld [vmem:[#allocation3] sm:$0xff]
    %v49 = vld [vmem:[#allocation3 + $0x8] sm:$0xff]
    %v50 = vld [vmem:[#allocation3 + $0x10] sm:$0xff]
    %v51 = vld [vmem:[#allocation3 + $0x18] sm:$0xff]
    %v52 = vld [vmem:[#allocation3 + $0x20] sm:$0xff]
    %v53 = vld [vmem:[#allocation3 + $0x28] sm:$0xff]
    %v54 = vld [vmem:[#allocation3 + $0x30] sm:$0xff]
    %v55 = vld [vmem:[#allocation3 + $0x38] sm:$0xff]
    %v56 = vld [vmem:[#allocation3 + $0x40] sm:$0xff]
    %v57 = vld [vmem:[#allocation3 + $0x48] sm:$0xff]
    %v58 = vld [vmem:[#allocation3 + $0x50] sm:$0xff]
    %v59 = vld [vmem:[#allocation3 + $0x58] sm:$0xff]
    %v60 = vld [vmem:[#allocation3 + $0x60] sm:$0xff]
    %v61 = vld [vmem:[#allocation3 + $0x68] sm:$0xff]
    %v62 = vld [vmem:[#allocation3 + $0x70] sm:$0xff]
    %v63 = vld [vmem:[#allocation3 + $0x78] sm:$0xff]
    %v64 = vld [vmem:[#allocation3 + $0x80] sm:$0xff]
    %v65 = vld [vmem:[#allocation3 + $0x88] sm:$0xff]
    %v66 = vld [vmem:[#allocation3 + $0x90] sm:$0xff]
    %v67 = vld [vmem:[#allocation3 + $0x98] sm:$0xff]
    %vm68 = vcmask 326656
    %v70 = vsel %vm68, %v47, 0
    %v72 = vand.u32 %v49, 4294901760
    %73 = vmatprep.subr.mxu0 %v72
    %v74 = vand.u32 %v48, 4294901760
    %75 = vmatpush1.msra.mxu0 %v74
    %v76 = vand.u32 %v53, 4294901760
    %77 = vmatprep.subr.mxu0 %v76
    %v78 = vand.u32 %v52, 4294901760
    %79 = vmatpush1.msra.mxu0 %v78
    %v80 = vand.u32 %v57, 4294901760
    %81 = vmatprep.subr.mxu0 %v80
    %v82 = vand.u32 %v56, 4294901760
    %83 = vmatpush1.msra.mxu0 %v82
    %v84 = vand.u32 %v61, 4294901760
    %85 = vmatprep.subr.mxu0 %v84
    %v86 = vand.u32 %v60, 4294901760
    %87 = vmatpush1.msra.mxu0 %v86
    %v88 = vand.u32 %v65, 4294901760
    %89 = vmatprep.subr.mxu0 %v88
    %v90 = vand.u32 %v64, 4294901760
    %91 = vmatpush1.msra.mxu0 %v90
    %92 = vmatprep.subr.mxu0 0.0
    %93 = vmatpush1.msra.mxu0 0.0
    %94 = vmatprep.subr.mxu0 0.0
    %95 = vmatpush1.msra.mxu0 0.0
    %96 = vmatprep.subr.mxu0 0.0
    %97 = vmatpush1.msra.mxu0 0.0
    %98 = vmatprep.subr.mxu0 0.0
    %99 = vmatpush1.msra.mxu0 0.0
    %100 = vmatprep.subr.mxu0 0.0
    %101 = vmatpush1.msra.mxu0 0.0
    %102 = vmatprep.subr.mxu0 0.0
    %103 = vmatpush1.msra.mxu0 0.0
    %104 = vmatprep.subr.mxu0 0.0
    %105 = vmatpush1.msra.mxu0 0.0
    %106 = vmatprep.subr.mxu0 0.0
    %107 = vmatpush1.msra.mxu0 0.0
    %108 = vmatprep.subr.mxu0 0.0
    %109 = vmatpush1.msra.mxu0 0.0
    %110 = vmatprep.subr.mxu0 0.0
    %111 = vmatpush1.msra.mxu0 0.0
    %112 = vmatprep.subr.mxu0 0.0
    %113 = vmatpush1.msra.mxu0 0.0
    %114 = vmatprep.subr.mxu0 0.0
    %115 = vmatpush1.msra.mxu0 0.0
    %116 = vmatprep.subr.mxu0 0.0
    %117 = vmatpush1.msra.mxu0 0.0
    %118 = vmatprep.subr.mxu0 0.0
    %119 = vmatpush1.msra.mxu0 0.0
    %120 = vmatprep.subr.mxu0 0.0
    %121 = vmatpush1.msra.mxu0 0.0
    %122 = vmatprep.subr.mxu0 0.0
    %123 = vmatpush1.msra.mxu0 0.0
    %124 = vmatprep.subr.mxu0 0.0
    %125 = vmatpush1.msra.mxu0 0.0
    %126 = vmatprep.subr.mxu0 0.0
    %127 = vmatpush1.msra.mxu0 0.0
    %128 = vmatprep.subr.mxu0 0.0
    %129 = vmatpush1.msra.mxu0 0.0
    %130 = vmatprep.subr.mxu0 0.0
    %131 = vmatpush1.msra.mxu0 0.0
    %132 = vmatprep.subr.mxu0 0.0
    %133 = vmatpush1.msra.mxu0 0.0
    %134 = vmatprep.subr.mxu0 0.0
    %135 = vmatpush1.msra.mxu0 0.0
    %136 = vmatprep.subr.mxu0 0.0
    %137 = vmatpush1.msra.mxu0 0.0
    %138 = vmatprep.subr.mxu0 0.0
    %139 = vmatpush1.msra.mxu0 0.0
    %140 = vmatprep.subr.mxu0 0.0
    %141 = vmatpush1.msra.mxu0 0.0
    %142 = vmatprep.subr.mxu0 0.0
    %143 = vmatpush1.msra.mxu0 0.0
    %144 = vmatprep.subr.mxu0 0.0
    %145 = vmatpush1.msra.mxu0 0.0
    %146 = vmatprep.mubr.f32.mxu0 0.0
    %v147 = vand.u32 %v70, 4294901760
    %v148 = vsub.f32 %v70, %v147
    %v149 = vand.u32 %v148, 4294901760
    %v150 = vsub.f32 %v148, %v149
    %v151 = vand.u32 %v150, 4294901760
    %152 = vmatmul.mubr.f32.gmra.mrb[0].mxu0 %v151
    %v153 = vpop.f32.mrb[0].mxu0
    %v154 = vadd.f32 0.0, %v153
    %v155 = vpop.f32.mrb[0].mxu0
    %v156 = vadd.f32 0.0, %v155
    %157 = vdwg.mxu0
    %v158 = vand.u32 %v49, 4294901760
    %v159 = vsub.f32 %v49, %v158
    %v160 = vand.u32 %v159, 4294901760
    %v161 = vsub.f32 %v159, %v160
    %v162 = vand.u32 %v161, 4294901760
    %163 = vmatprep.subr.mxu0 %v162
    %v164 = vand.u32 %v48, 4294901760
    %v165 = vsub.f32 %v48, %v164
    %v166 = vand.u32 %v165, 4294901760
    %v167 = vsub.f32 %v165, %v166
    %v168 = vand.u32 %v167, 4294901760
    %169 = vmatpush1.msra.mxu0 %v168
    %v170 = vand.u32 %v53, 4294901760
    %v171 = vsub.f32 %v53, %v170
    %v172 = vand.u32 %v171, 4294901760
    %v173 = vsub.f32 %v171, %v172
    %v174 = vand.u32 %v173, 4294901760
    %175 = vmatprep.subr.mxu0 %v174
    %v176 = vand.u32 %v52, 4294901760
    %v177 = vsub.f32 %v52, %v176
    %v178 = vand.u32 %v177, 4294901760
    %v179 = vsub.f32 %v177, %v178
    %v180 = vand.u32 %v179, 4294901760
    %181 = vmatpush1.msra.mxu0 %v180
    %v182 = vand.u32 %v57, 4294901760
    %v183 = vsub.f32 %v57, %v182
    %v184 = vand.u32 %v183, 4294901760
    %v185 = vsub.f32 %v183, %v184
    %v186 = vand.u32 %v185, 4294901760
    %187 = vmatprep.subr.mxu0 %v186
    %v188 = vand.u32 %v56, 4294901760
    %v189 = vsub.f32 %v56, %v188
    %v190 = vand.u32 %v189, 4294901760
    %v191 = vsub.f32 %v189, %v190
    %v192 = vand.u32 %v191, 4294901760
    %193 = vmatpush1.msra.mxu0 %v192
    %v194 = vand.u32 %v61, 4294901760
    %v195 = vsub.f32 %v61, %v194
    %v196 = vand.u32 %v195, 4294901760
    %v197 = vsub.f32 %v195, %v196
    %v198 = vand.u32 %v197, 4294901760
    %199 = vmatprep.subr.mxu0 %v198
    %v200 = vand.u32 %v60, 4294901760
    %v201 = vsub.f32 %v60, %v200
    %v202 = vand.u32 %v201, 4294901760
    %v203 = vsub.f32 %v201, %v202
    %v204 = vand.u32 %v203, 4294901760
    %205 = vmatpush1.msra.mxu0 %v204
    %v206 = vand.u32 %v65, 4294901760
    %v207 = vsub.f32 %v65, %v206
    %v208 = vand.u32 %v207, 4294901760
    %v209 = vsub.f32 %v207, %v208
    %v210 = vand.u32 %v209, 4294901760
    %211 = vmatprep.subr.mxu0 %v210
    %v212 = vand.u32 %v64, 4294901760
    %v213 = vsub.f32 %v64, %v212
    %v214 = vand.u32 %v213, 4294901760
    %v215 = vsub.f32 %v213, %v214
    %v216 = vand.u32 %v215, 4294901760
    %217 = vmatpush1.msra.mxu0 %v216
    %218 = vmatprep.subr.mxu0 0.0
    %219 = vmatpush1.msra.mxu0 0.0
    %220 = vmatprep.subr.mxu0 0.0
    %221 = vmatpush1.msra.mxu0 0.0
    %222 = vmatprep.subr.mxu0 0.0
    %223 = vmatpush1.msra.mxu0 0.0
    %224 = vmatprep.subr.mxu0 0.0
    %225 = vmatpush1.msra.mxu0 0.0
    %226 = vmatprep.subr.mxu0 0.0
    %227 = vmatpush1.msra.mxu0 0.0
    %228 = vmatprep.subr.mxu0 0.0
    %229 = vmatpush1.msra.mxu0 0.0
    %230 = vmatprep.subr.mxu0 0.0
    %231 = vmatpush1.msra.mxu0 0.0
    %232 = vmatprep.subr.mxu0 0.0
    %233 = vmatpush1.msra.mxu0 0.0
    %234 = vmatprep.subr.mxu0 0.0
    %235 = vmatpush1.msra.mxu0 0.0
    %236 = vmatprep.subr.mxu0 0.0
    %237 = vmatpush1.msra.mxu0 0.0
    %238 = vmatprep.subr.mxu0 0.0
    %239 = vmatpush1.msra.mxu0 0.0
    %240 = vmatprep.subr.mxu0 0.0
    %241 = vmatpush1.msra.mxu0 0.0
    %242 = vmatprep.subr.mxu0 0.0
    %243 = vmatpush1.msra.mxu0 0.0
    %244 = vmatprep.subr.mxu0 0.0
    %245 = vmatpush1.msra.mxu0 0.0
    %246 = vmatprep.subr.mxu0 0.0
    %247 = vmatpush1.msra.mxu0 0.0
    %248 = vmatprep.subr.mxu0 0.0
    %249 = vmatpush1.msra.mxu0 0.0
    %250 = vmatprep.subr.mxu0 0.0
    %251 = vmatpush1.msra.mxu0 0.0
    %252 = vmatprep.subr.mxu0 0.0
    %253 = vmatpush1.msra.mxu0 0.0
    %254 = vmatprep.subr.mxu0 0.0
    %255 = vmatpush1.msra.mxu0 0.0
    %256 = vmatprep.subr.mxu0 0.0
    %257 = vmatpush1.msra.mxu0 0.0
    %258 = vmatprep.subr.mxu0 0.0
    %259 = vmatpush1.msra.mxu0 0.0
    %260 = vmatprep.subr.mxu0 0.0
    %261 = vmatpush1.msra.mxu0 0.0
    %262 = vmatprep.subr.mxu0 0.0
    %263 = vmatpush1.msra.mxu0 0.0
    %264 = vmatprep.subr.mxu0 0.0
    %265 = vmatpush1.msra.mxu0 0.0
    %266 = vmatprep.subr.mxu0 0.0
    %267 = vmatpush1.msra.mxu0 0.0
    %268 = vmatprep.subr.mxu0 0.0
    %269 = vmatpush1.msra.mxu0 0.0
    %270 = vmatprep.subr.mxu0 0.0
    %271 = vmatpush1.msra.mxu0 0.0
    %272 = vmatprep.mubr.f32.mxu0 0.0
    %v273 = vand.u32 %v70, 4294901760
    %274 = vmatmul.mubr.f32.gmra.mrb[0].mxu0 %v273
    %v275 = vpop.f32.mrb[0].mxu0
    %v276 = vadd.f32 %v154, %v275
    %v277 = vpop.f32.mrb[0].mxu0
    %v278 = vadd.f32 %v156, %v277
    %279 = vdwg.mxu0
    %v280 = vand.u32 %v49, 4294901760
    %v281 = vsub.f32 %v49, %v280
    %282 = vmatprep.subr.mxu0 %v281
    %v283 = vand.u32 %v48, 4294901760
    %v284 = vsub.f32 %v48, %v283
    %285 = vmatpush1.msra.mxu0 %v284
    %v286 = vand.u32 %v53, 4294901760
    %v287 = vsub.f32 %v53, %v286
    %288 = vmatprep.subr.mxu0 %v287
    %v289 = vand.u32 %v52, 4294901760
    %v290 = vsub.f32 %v52, %v289
    %291 = vmatpush1.msra.mxu0 %v290
    %v292 = vand.u32 %v57, 4294901760
    %v293 = vsub.f32 %v57, %v292
    %294 = vmatprep.subr.mxu0 %v293
    %v295 = vand.u32 %v56, 4294901760
    %v296 = vsub.f32 %v56, %v295
    %297 = vmatpush1.msra.mxu0 %v296
    %v298 = vand.u32 %v61, 4294901760
    %v299 = vsub.f32 %v61, %v298
    %300 = vmatprep.subr.mxu0 %v299
    %v301 = vand.u32 %v60, 4294901760
    %v302 = vsub.f32 %v60, %v301
    %303 = vmatpush1.msra.mxu0 %v302
    %v304 = vand.u32 %v65, 4294901760
    %v305 = vsub.f32 %v65, %v304
    %306 = vmatprep.subr.mxu0 %v305
    %v307 = vand.u32 %v64, 4294901760
    %v308 = vsub.f32 %v64, %v307
    %309 = vmatpush1.msra.mxu0 %v308
    %310 = vmatprep.subr.mxu0 0.0
    %311 = vmatpush1.msra.mxu0 0.0
    %312 = vmatprep.subr.mxu0 0.0
    %313 = vmatpush1.msra.mxu0 0.0
    %314 = vmatprep.subr.mxu0 0.0
    %315 = vmatpush1.msra.mxu0 0.0
    %316 = vmatprep.subr.mxu0 0.0
    %317 = vmatpush1.msra.mxu0 0.0
    %318 = vmatprep.subr.mxu0 0.0
    %319 = vmatpush1.msra.mxu0 0.0
    %320 = vmatprep.subr.mxu0 0.0
    %321 = vmatpush1.msra.mxu0 0.0
    %322 = vmatprep.subr.mxu0 0.0
    %323 = vmatpush1.msra.mxu0 0.0
    %324 = vmatprep.subr.mxu0 0.0
    %325 = vmatpush1.msra.mxu0 0.0
    %326 = vmatprep.subr.mxu0 0.0
    %327 = vmatpush1.msra.mxu0 0.0
    %328 = vmatprep.subr.mxu0 0.0
    %329 = vmatpush1.msra.mxu0 0.0
    %330 = vmatprep.subr.mxu0 0.0
    %331 = vmatpush1.msra.mxu0 0.0
    %332 = vmatprep.subr.mxu0 0.0
    %333 = vmatpush1.msra.mxu0 0.0
    %334 = vmatprep.subr.mxu0 0.0
    %335 = vmatpush1.msra.mxu0 0.0
    %336 = vmatprep.subr.mxu0 0.0
    %337 = vmatpush1.msra.mxu0 0.0
    %338 = vmatprep.subr.mxu0 0.0
    %339 = vmatpush1.msra.mxu0 0.0
    %340 = vmatprep.subr.mxu0 0.0
    %341 = vmatpush1.msra.mxu0 0.0
    %342 = vmatprep.subr.mxu0 0.0
    %343 = vmatpush1.msra.mxu0 0.0
    %344 = vmatprep.subr.mxu0 0.0
    %345 = vmatpush1.msra.mxu0 0.0
    %346 = vmatprep.subr.mxu0 0.0
    %347 = vmatpush1.msra.mxu0 0.0
    %348 = vmatprep.subr.mxu0 0.0
    %349 = vmatpush1.msra.mxu0 0.0
    %350 = vmatprep.subr.mxu0 0.0
    %351 = vmatpush1.msra.mxu0 0.0
    %352 = vmatprep.subr.mxu0 0.0
    %353 = vmatpush1.msra.mxu0 0.0
    %354 = vmatprep.subr.mxu0 0.0
    %355 = vmatpush1.msra.mxu0 0.0
    %356 = vmatprep.subr.mxu0 0.0
    %357 = vmatpush1.msra.mxu0 0.0
    %358 = vmatprep.subr.mxu0 0.0
    %359 = vmatpush1.msra.mxu0 0.0
    %360 = vmatprep.subr.mxu0 0.0
    %361 = vmatpush1.msra.mxu0 0.0
    %362 = vmatprep.subr.mxu0 0.0
    %363 = vmatpush1.msra.mxu0 0.0
    %364 = vmatprep.mubr.f32.mxu0 0.0
    %v365 = vand.u32 %v70, 4294901760
    %v366 = vsub.f32 %v70, %v365
    %367 = vmatmul.mubr.f32.gmra.mrb[0].mxu0 %v366
    %v368 = vpop.f32.mrb[0].mxu0
    %v369 = vadd.f32 %v276, %v368
    %v370 = vpop.f32.mrb[0].mxu0
    %v371 = vadd.f32 %v278, %v370
    %372 = vdwg.mxu0
    %v373 = vand.u32 %v49, 4294901760
    %374 = vmatprep.subr.mxu0 %v373
    %v375 = vand.u32 %v48, 4294901760
    %376 = vmatpush1.msra.mxu0 %v375
    %v377 = vand.u32 %v53, 4294901760
    %378 = vmatprep.subr.mxu0 %v377
    %v379 = vand.u32 %v52, 4294901760
    %380 = vmatpush1.msra.mxu0 %v379
    %v381 = vand.u32 %v57, 4294901760
    %382 = vmatprep.subr.mxu0 %v381
    %v383 = vand.u32 %v56, 4294901760
    %384 = vmatpush1.msra.mxu0 %v383
    %v385 = vand.u32 %v61, 4294901760
    %386 = vmatprep.subr.mxu0 %v385
    %v387 = vand.u32 %v60, 4294901760
    %388 = vmatpush1.msra.mxu0 %v387
    %v389 = vand.u32 %v65, 4294901760
    %390 = vmatprep.subr.mxu0 %v389
    %v391 = vand.u32 %v64, 4294901760
    %392 = vmatpush1.msra.mxu0 %v391
    %393 = vmatprep.subr.mxu0 0.0
    %394 = vmatpush1.msra.mxu0 0.0
    %395 = vmatprep.subr.mxu0 0.0
    %396 = vmatpush1.msra.mxu0 0.0
    %397 = vmatprep.subr.mxu0 0.0
    %398 = vmatpush1.msra.mxu0 0.0
    %399 = vmatprep.subr.mxu0 0.0
    %400 = vmatpush1.msra.mxu0 0.0
    %401 = vmatprep.subr.mxu0 0.0
    %402 = vmatpush1.msra.mxu0 0.0
    %403 = vmatprep.subr.mxu0 0.0
    %404 = vmatpush1.msra.mxu0 0.0
    %405 = vmatprep.subr.mxu0 0.0
    %406 = vmatpush1.msra.mxu0 0.0
    %407 = vmatprep.subr.mxu0 0.0
    %408 = vmatpush1.msra.mxu0 0.0
    %409 = vmatprep.subr.mxu0 0.0
    %410 = vmatpush1.msra.mxu0 0.0
    %411 = vmatprep.subr.mxu0 0.0
    %412 = vmatpush1.msra.mxu0 0.0
    %413 = vmatprep.subr.mxu0 0.0
    %414 = vmatpush1.msra.mxu0 0.0
    %415 = vmatprep.subr.mxu0 0.0
    %416 = vmatpush1.msra.mxu0 0.0
    %417 = vmatprep.subr.mxu0 0.0
    %418 = vmatpush1.msra.mxu0 0.0
    %419 = vmatprep.subr.mxu0 0.0
    %420 = vmatpush1.msra.mxu0 0.0
    %421 = vmatprep.subr.mxu0 0.0
    %422 = vmatpush1.msra.mxu0 0.0
    %423 = vmatprep.subr.mxu0 0.0
    %424 = vmatpush1.msra.mxu0 0.0
    %425 = vmatprep.subr.mxu0 0.0
    %426 = vmatpush1.msra.mxu0 0.0
    %427 = vmatprep.subr.mxu0 0.0
    %428 = vmatpush1.msra.mxu0 0.0
    %429 = vmatprep.subr.mxu0 0.0
    %430 = vmatpush1.msra.mxu0 0.0
    %431 = vmatprep.subr.mxu0 0.0
    %432 = vmatpush1.msra.mxu0 0.0
    %433 = vmatprep.subr.mxu0 0.0
    %434 = vmatpush1.msra.mxu0 0.0
    %435 = vmatprep.subr.mxu0 0.0
    %436 = vmatpush1.msra.mxu0 0.0
    %437 = vmatprep.subr.mxu0 0.0
    %438 = vmatpush1.msra.mxu0 0.0
    %439 = vmatprep.subr.mxu0 0.0
    %440 = vmatpush1.msra.mxu0 0.0
    %441 = vmatprep.subr.mxu0 0.0
    %442 = vmatpush1.msra.mxu0 0.0
    %443 = vmatprep.subr.mxu0 0.0
    %444 = vmatpush1.msra.mxu0 0.0
    %445 = vmatprep.subr.mxu0 0.0
    %446 = vmatpush1.msra.mxu0 0.0
    %447 = vmatprep.mubr.f32.mxu0 0.0
    %v448 = vand.u32 %v70, 4294901760
    %v449 = vsub.f32 %v70, %v448
    %v450 = vand.u32 %v449, 4294901760
    %451 = vmatmul.mubr.f32.gmra.mrb[0].mxu0 %v450
    %v452 = vpop.f32.mrb[0].mxu0
    %v453 = vadd.f32 %v369, %v452
    %v454 = vpop.f32.mrb[0].mxu0
    %v455 = vadd.f32 %v371, %v454
    %456 = vdwg.mxu0
    %v457 = vand.u32 %v49, 4294901760
    %v458 = vsub.f32 %v49, %v457
    %v459 = vand.u32 %v458, 4294901760
    %460 = vmatprep.subr.mxu0 %v459
    %v461 = vand.u32 %v48, 4294901760
    %v462 = vsub.f32 %v48, %v461
    %v463 = vand.u32 %v462, 4294901760
    %464 = vmatpush1.msra.mxu0 %v463
    %v465 = vand.u32 %v53, 4294901760
    %v466 = vsub.f32 %v53, %v465
    %v467 = vand.u32 %v466, 4294901760
    %468 = vmatprep.subr.mxu0 %v467
    %v469 = vand.u32 %v52, 4294901760
    %v470 = vsub.f32 %v52, %v469
    %v471 = vand.u32 %v470, 4294901760
    %472 = vmatpush1.msra.mxu0 %v471
    %v473 = vand.u32 %v57, 4294901760
    %v474 = vsub.f32 %v57, %v473
    %v475 = vand.u32 %v474, 4294901760
    %476 = vmatprep.subr.mxu0 %v475
    %v477 = vand.u32 %v56, 4294901760
    %v478 = vsub.f32 %v56, %v477
    %v479 = vand.u32 %v478, 4294901760
    %480 = vmatpush1.msra.mxu0 %v479
    %v481 = vand.u32 %v61, 4294901760
    %v482 = vsub.f32 %v61, %v481
    %v483 = vand.u32 %v482, 4294901760
    %484 = vmatprep.subr.mxu0 %v483
    %v485 = vand.u32 %v60, 4294901760
    %v486 = vsub.f32 %v60, %v485
    %v487 = vand.u32 %v486, 4294901760
    %488 = vmatpush1.msra.mxu0 %v487
    %v489 = vand.u32 %v65, 4294901760
    %v490 = vsub.f32 %v65, %v489
    %v491 = vand.u32 %v490, 4294901760
    %492 = vmatprep.subr.mxu0 %v491
    %v493 = vand.u32 %v64, 4294901760
    %v494 = vsub.f32 %v64, %v493
    %v495 = vand.u32 %v494, 4294901760
    %496 = vmatpush1.msra.mxu0 %v495
    %497 = vmatprep.subr.mxu0 0.0
    %498 = vmatpush1.msra.mxu0 0.0
    %499 = vmatprep.subr.mxu0 0.0
    %500 = vmatpush1.msra.mxu0 0.0
    %501 = vmatprep.subr.mxu0 0.0
    %502 = vmatpush1.msra.mxu0 0.0
    %503 = vmatprep.subr.mxu0 0.0
    %504 = vmatpush1.msra.mxu0 0.0
    %505 = vmatprep.subr.mxu0 0.0
    %506 = vmatpush1.msra.mxu0 0.0
    %507 = vmatprep.subr.mxu0 0.0
    %508 = vmatpush1.msra.mxu0 0.0
    %509 = vmatprep.subr.mxu0 0.0
    %510 = vmatpush1.msra.mxu0 0.0
    %511 = vmatprep.subr.mxu0 0.0
    %512 = vmatpush1.msra.mxu0 0.0
    %513 = vmatprep.subr.mxu0 0.0
    %514 = vmatpush1.msra.mxu0 0.0
    %515 = vmatprep.subr.mxu0 0.0
    %516 = vmatpush1.msra.mxu0 0.0
    %517 = vmatprep.subr.mxu0 0.0
    %518 = vmatpush1.msra.mxu0 0.0
    %519 = vmatprep.subr.mxu0 0.0
    %520 = vmatpush1.msra.mxu0 0.0
    %521 = vmatprep.subr.mxu0 0.0
    %522 = vmatpush1.msra.mxu0 0.0
    %523 = vmatprep.subr.mxu0 0.0
    %524 = vmatpush1.msra.mxu0 0.0
    %525 = vmatprep.subr.mxu0 0.0
    %526 = vmatpush1.msra.mxu0 0.0
    %527 = vmatprep.subr.mxu0 0.0
    %528 = vmatpush1.msra.mxu0 0.0
    %529 = vmatprep.subr.mxu0 0.0
    %530 = vmatpush1.msra.mxu0 0.0
    %531 = vmatprep.subr.mxu0 0.0
    %532 = vmatpush1.msra.mxu0 0.0
    %533 = vmatprep.subr.mxu0 0.0
    %534 = vmatpush1.msra.mxu0 0.0
    %535 = vmatprep.subr.mxu0 0.0
    %536 = vmatpush1.msra.mxu0 0.0
    %537 = vmatprep.subr.mxu0 0.0
    %538 = vmatpush1.msra.mxu0 0.0
    %539 = vmatprep.subr.mxu0 0.0
    %540 = vmatpush1.msra.mxu0 0.0
    %541 = vmatprep.subr.mxu0 0.0
    %542 = vmatpush1.msra.mxu0 0.0
    %543 = vmatprep.subr.mxu0 0.0
    %544 = vmatpush1.msra.mxu0 0.0
    %545 = vmatprep.subr.mxu0 0.0
    %546 = vmatpush1.msra.mxu0 0.0
    %547 = vmatprep.subr.mxu0 0.0
    %548 = vmatpush1.msra.mxu0 0.0
    %549 = vmatprep.subr.mxu0 0.0
    %550 = vmatpush1.msra.mxu0 0.0
    %551 = vmatprep.mubr.f32.mxu0 0.0
    %v552 = vand.u32 %v70, 4294901760
    %553 = vmatmul.mubr.f32.gmra.mrb[0].mxu0 %v552
    %v554 = vpop.f32.mrb[0].mxu0
    %v555 = vadd.f32 %v453, %v554
    %v556 = vpop.f32.mrb[0].mxu0
    %v557 = vadd.f32 %v455, %v556
    %558 = vdwg.mxu0
    %v559 = vand.u32 %v49, 4294901760
    %560 = vmatprep.subr.mxu0 %v559
    %v561 = vand.u32 %v48, 4294901760
    %562 = vmatpush1.msra.mxu0 %v561
    %v563 = vand.u32 %v53, 4294901760
    %564 = vmatprep.subr.mxu0 %v563
    %v565 = vand.u32 %v52, 4294901760
    %566 = vmatpush1.msra.mxu0 %v565
    %v567 = vand.u32 %v57, 4294901760
    %568 = vmatprep.subr.mxu0 %v567
    %v569 = vand.u32 %v56, 4294901760
    %570 = vmatpush1.msra.mxu0 %v569
    %v571 = vand.u32 %v61, 4294901760
    %572 = vmatprep.subr.mxu0 %v571
    %v573 = vand.u32 %v60, 4294901760
    %574 = vmatpush1.msra.mxu0 %v573
    %v575 = vand.u32 %v65, 4294901760
    %576 = vmatprep.subr.mxu0 %v575
    %v577 = vand.u32 %v64, 4294901760
    %578 = vmatpush1.msra.mxu0 %v577
    %579 = vmatprep.subr.mxu0 0.0
    %580 = vmatpush1.msra.mxu0 0.0
    %581 = vmatprep.subr.mxu0 0.0
    %582 = vmatpush1.msra.mxu0 0.0
    %583 = vmatprep.subr.mxu0 0.0
    %584 = vmatpush1.msra.mxu0 0.0
    %585 = vmatprep.subr.mxu0 0.0
    %586 = vmatpush1.msra.mxu0 0.0
    %587 = vmatprep.subr.mxu0 0.0
    %588 = vmatpush1.msra.mxu0 0.0
    %589 = vmatprep.subr.mxu0 0.0
    %590 = vmatpush1.msra.mxu0 0.0
    %591 = vmatprep.subr.mxu0 0.0
    %592 = vmatpush1.msra.mxu0 0.0
    %593 = vmatprep.subr.mxu0 0.0
    %594 = vmatpush1.msra.mxu0 0.0
    %595 = vmatprep.subr.mxu0 0.0
    %596 = vmatpush1.msra.mxu0 0.0
    %597 = vmatprep.subr.mxu0 0.0
    %598 = vmatpush1.msra.mxu0 0.0
    %599 = vmatprep.subr.mxu0 0.0
    %600 = vmatpush1.msra.mxu0 0.0
    %601 = vmatprep.subr.mxu0 0.0
    %602 = vmatpush1.msra.mxu0 0.0
    %603 = vmatprep.subr.mxu0 0.0
    %604 = vmatpush1.msra.mxu0 0.0
    %605 = vmatprep.subr.mxu0 0.0
    %606 = vmatpush1.msra.mxu0 0.0
    %607 = vmatprep.subr.mxu0 0.0
    %608 = vmatpush1.msra.mxu0 0.0
    %609 = vmatprep.subr.mxu0 0.0
    %610 = vmatpush1.msra.mxu0 0.0
    %611 = vmatprep.subr.mxu0 0.0
    %612 = vmatpush1.msra.mxu0 0.0
    %613 = vmatprep.subr.mxu0 0.0
    %614 = vmatpush1.msra.mxu0 0.0
    %615 = vmatprep.subr.mxu0 0.0
    %616 = vmatpush1.msra.mxu0 0.0
    %617 = vmatprep.subr.mxu0 0.0
    %618 = vmatpush1.msra.mxu0 0.0
    %619 = vmatprep.subr.mxu0 0.0
    %620 = vmatpush1.msra.mxu0 0.0
    %621 = vmatprep.subr.mxu0 0.0
    %622 = vmatpush1.msra.mxu0 0.0
    %623 = vmatprep.subr.mxu0 0.0
    %624 = vmatpush1.msra.mxu0 0.0
    %625 = vmatprep.subr.mxu0 0.0
    %626 = vmatpush1.msra.mxu0 0.0
    %627 = vmatprep.subr.mxu0 0.0
    %628 = vmatpush1.msra.mxu0 0.0
    %629 = vmatprep.subr.mxu0 0.0
    %630 = vmatpush1.msra.mxu0 0.0
    %631 = vmatprep.subr.mxu0 0.0
    %632 = vmatpush1.msra.mxu0 0.0
    %633 = vmatprep.mubr.f32.mxu0 0.0
    %v634 = vand.u32 %v70, 4294901760
    %635 = vmatmul.mubr.f32.gmra.mrb[0].mxu0 %v634
    %v636 = vpop.f32.mrb[0].mxu0
    %v637 = vadd.f32 %v555, %v636
    %v638 = vpop.f32.mrb[0].mxu0
    %v639 = vadd.f32 %v557, %v638
    %640 = vdwg.mxu0
    %v641 = vand.u32 %v51, 4294901760
    %642 = vmatprep.subr.mxu0 %v641
    %v643 = vand.u32 %v50, 4294901760
    %644 = vmatpush1.msra.mxu0 %v643
    %v645 = vand.u32 %v55, 4294901760
    %646 = vmatprep.subr.mxu0 %v645
    %v647 = vand.u32 %v54, 4294901760
    %648 = vmatpush1.msra.mxu0 %v647
    %v649 = vand.u32 %v59, 4294901760
    %650 = vmatprep.subr.mxu0 %v649
    %v651 = vand.u32 %v58, 4294901760
    %652 = vmatpush1.msra.mxu0 %v651
    %v653 = vand.u32 %v63, 4294901760
    %654 = vmatprep.subr.mxu0 %v653
    %v655 = vand.u32 %v62, 4294901760
    %656 = vmatpush1.msra.mxu0 %v655
    %v657 = vand.u32 %v67, 4294901760
    %658 = vmatprep.subr.mxu0 %v657
    %v659 = vand.u32 %v66, 4294901760
    %660 = vmatpush1.msra.mxu0 %v659
    %661 = vmatprep.subr.mxu0 0.0
    %662 = vmatpush1.msra.mxu0 0.0
    %663 = vmatprep.subr.mxu0 0.0
    %664 = vmatpush1.msra.mxu0 0.0
    %665 = vmatprep.subr.mxu0 0.0
    %666 = vmatpush1.msra.mxu0 0.0
    %667 = vmatprep.subr.mxu0 0.0
    %668 = vmatpush1.msra.mxu0 0.0
    %669 = vmatprep.subr.mxu0 0.0
    %670 = vmatpush1.msra.mxu0 0.0
    %671 = vmatprep.subr.mxu0 0.0
    %672 = vmatpush1.msra.mxu0 0.0
    %673 = vmatprep.subr.mxu0 0.0
    %674 = vmatpush1.msra.mxu0 0.0
    %675 = vmatprep.subr.mxu0 0.0
    %676 = vmatpush1.msra.mxu0 0.0
    %677 = vmatprep.subr.mxu0 0.0
    %678 = vmatpush1.msra.mxu0 0.0
    %679 = vmatprep.subr.mxu0 0.0
    %680 = vmatpush1.msra.mxu0 0.0
    %681 = vmatprep.subr.mxu0 0.0
    %682 = vmatpush1.msra.mxu0 0.0
    %683 = vmatprep.subr.mxu0 0.0
    %684 = vmatpush1.msra.mxu0 0.0
    %685 = vmatprep.subr.mxu0 0.0
    %686 = vmatpush1.msra.mxu0 0.0
    %687 = vmatprep.subr.mxu0 0.0
    %688 = vmatpush1.msra.mxu0 0.0
    %689 = vmatprep.subr.mxu0 0.0
    %690 = vmatpush1.msra.mxu0 0.0
    %691 = vmatprep.subr.mxu0 0.0
    %692 = vmatpush1.msra.mxu0 0.0
    %693 = vmatprep.subr.mxu0 0.0
    %694 = vmatpush1.msra.mxu0 0.0
    %695 = vmatprep.subr.mxu0 0.0
    %696 = vmatpush1.msra.mxu0 0.0
    %697 = vmatprep.subr.mxu0 0.0
    %698 = vmatpush1.msra.mxu0 0.0
    %699 = vmatprep.subr.mxu0 0.0
    %700 = vmatpush1.msra.mxu0 0.0
    %701 = vmatprep.subr.mxu0 0.0
    %702 = vmatpush1.msra.mxu0 0.0
    %703 = vmatprep.subr.mxu0 0.0
    %704 = vmatpush1.msra.mxu0 0.0
    %705 = vmatprep.subr.mxu0 0.0
    %706 = vmatpush1.msra.mxu0 0.0
    %707 = vmatprep.subr.mxu0 0.0
    %708 = vmatpush1.msra.mxu0 0.0
    %709 = vmatprep.subr.mxu0 0.0
    %710 = vmatpush1.msra.mxu0 0.0
    %711 = vmatprep.subr.mxu0 0.0
    %712 = vmatpush1.msra.mxu0 0.0
    %713 = vmatprep.subr.mxu0 0.0
    %714 = vmatpush1.msra.mxu0 0.0
    %715 = vmatprep.mubr.f32.mxu0 0.0
    %v716 = vand.u32 %v70, 4294901760
    %v717 = vsub.f32 %v70, %v716
    %v718 = vand.u32 %v717, 4294901760
    %v719 = vsub.f32 %v717, %v718
    %v720 = vand.u32 %v719, 4294901760
    %721 = vmatmul.mubr.f32.gmra.mrb[0].mxu0 %v720
    %v722 = vpop.f32.mrb[0].mxu0
    %v723 = vadd.f32 0.0, %v722
    %v724 = vpop.f32.mrb[0].mxu0
    %v725 = vadd.f32 0.0, %v724
    %726 = vdwg.mxu0
    %v727 = vand.u32 %v51, 4294901760
    %v728 = vsub.f32 %v51, %v727
    %v729 = vand.u32 %v728, 4294901760
    %v730 = vsub.f32 %v728, %v729
    %v731 = vand.u32 %v730, 4294901760
    %732 = vmatprep.subr.mxu0 %v731
    %v733 = vand.u32 %v50, 4294901760
    %v734 = vsub.f32 %v50, %v733
    %v735 = vand.u32 %v734, 4294901760
    %v736 = vsub.f32 %v734, %v735
    %v737 = vand.u32 %v736, 4294901760
    %738 = vmatpush1.msra.mxu0 %v737
    %v739 = vand.u32 %v55, 4294901760
    %v740 = vsub.f32 %v55, %v739
    %v741 = vand.u32 %v740, 4294901760
    %v742 = vsub.f32 %v740, %v741
    %v743 = vand.u32 %v742, 4294901760
    %744 = vmatprep.subr.mxu0 %v743
    %v745 = vand.u32 %v54, 4294901760
    %v746 = vsub.f32 %v54, %v745
    %v747 = vand.u32 %v746, 4294901760
    %v748 = vsub.f32 %v746, %v747
    %v749 = vand.u32 %v748, 4294901760
    %750 = vmatpush1.msra.mxu0 %v749
    %v751 = vand.u32 %v59, 4294901760
    %v752 = vsub.f32 %v59, %v751
    %v753 = vand.u32 %v752, 4294901760
    %v754 = vsub.f32 %v752, %v753
    %v755 = vand.u32 %v754, 4294901760
    %756 = vmatprep.subr.mxu0 %v755
    %v757 = vand.u32 %v58, 4294901760
    %v758 = vsub.f32 %v58, %v757
    %v759 = vand.u32 %v758, 4294901760
    %v760 = vsub.f32 %v758, %v759
    %v761 = vand.u32 %v760, 4294901760
    %762 = vmatpush1.msra.mxu0 %v761
    %v763 = vand.u32 %v63, 4294901760
    %v764 = vsub.f32 %v63, %v763
    %v765 = vand.u32 %v764, 4294901760
    %v766 = vsub.f32 %v764, %v765
    %v767 = vand.u32 %v766, 4294901760
    %768 = vmatprep.subr.mxu0 %v767
    %v769 = vand.u32 %v62, 4294901760
    %v770 = vsub.f32 %v62, %v769
    %v771 = vand.u32 %v770, 4294901760
    %v772 = vsub.f32 %v770, %v771
    %v773 = vand.u32 %v772, 4294901760
    %774 = vmatpush1.msra.mxu0 %v773
    %v775 = vand.u32 %v67, 4294901760
    %v776 = vsub.f32 %v67, %v775
    %v777 = vand.u32 %v776, 4294901760
    %v778 = vsub.f32 %v776, %v777
    %v779 = vand.u32 %v778, 4294901760
    %780 = vmatprep.subr.mxu0 %v779
    %v781 = vand.u32 %v66, 4294901760
    %v782 = vsub.f32 %v66, %v781
    %v783 = vand.u32 %v782, 4294901760
    %v784 = vsub.f32 %v782, %v783
    %v785 = vand.u32 %v784, 4294901760
    %786 = vmatpush1.msra.mxu0 %v785
    %787 = vmatprep.subr.mxu0 0.0
    %788 = vmatpush1.msra.mxu0 0.0
    %789 = vmatprep.subr.mxu0 0.0
    %790 = vmatpush1.msra.mxu0 0.0
    %791 = vmatprep.subr.mxu0 0.0
    %792 = vmatpush1.msra.mxu0 0.0
    %793 = vmatprep.subr.mxu0 0.0
    %794 = vmatpush1.msra.mxu0 0.0
    %795 = vmatprep.subr.mxu0 0.0
    %796 = vmatpush1.msra.mxu0 0.0
    %797 = vmatprep.subr.mxu0 0.0
    %798 = vmatpush1.msra.mxu0 0.0
    %799 = vmatprep.subr.mxu0 0.0
    %800 = vmatpush1.msra.mxu0 0.0
    %801 = vmatprep.subr.mxu0 0.0
    %802 = vmatpush1.msra.mxu0 0.0
    %803 = vmatprep.subr.mxu0 0.0
    %804 = vmatpush1.msra.mxu0 0.0
    %805 = vmatprep.subr.mxu0 0.0
    %806 = vmatpush1.msra.mxu0 0.0
    %807 = vmatprep.subr.mxu0 0.0
    %808 = vmatpush1.msra.mxu0 0.0
    %809 = vmatprep.subr.mxu0 0.0
    %810 = vmatpush1.msra.mxu0 0.0
    %811 = vmatprep.subr.mxu0 0.0
    %812 = vmatpush1.msra.mxu0 0.0
    %813 = vmatprep.subr.mxu0 0.0
    %814 = vmatpush1.msra.mxu0 0.0
    %815 = vmatprep.subr.mxu0 0.0
    %816 = vmatpush1.msra.mxu0 0.0
    %817 = vmatprep.subr.mxu0 0.0
    %818 = vmatpush1.msra.mxu0 0.0
    %819 = vmatprep.subr.mxu0 0.0
    %820 = vmatpush1.msra.mxu0 0.0
    %821 = vmatprep.subr.mxu0 0.0
    %822 = vmatpush1.msra.mxu0 0.0
    %823 = vmatprep.subr.mxu0 0.0
    %824 = vmatpush1.msra.mxu0 0.0
    %825 = vmatprep.subr.mxu0 0.0
    %826 = vmatpush1.msra.mxu0 0.0
    %827 = vmatprep.subr.mxu0 0.0
    %828 = vmatpush1.msra.mxu0 0.0
    %829 = vmatprep.subr.mxu0 0.0
    %830 = vmatpush1.msra.mxu0 0.0
    %831 = vmatprep.subr.mxu0 0.0
    %832 = vmatpush1.msra.mxu0 0.0
    %833 = vmatprep.subr.mxu0 0.0
    %834 = vmatpush1.msra.mxu0 0.0
    %835 = vmatprep.subr.mxu0 0.0
    %836 = vmatpush1.msra.mxu0 0.0
    %837 = vmatprep.subr.mxu0 0.0
    %838 = vmatpush1.msra.mxu0 0.0
    %839 = vmatprep.subr.mxu0 0.0
    %840 = vmatpush1.msra.mxu0 0.0
    %841 = vmatprep.mubr.f32.mxu0 0.0
    %v842 = vand.u32 %v70, 4294901760
    %843 = vmatmul.mubr.f32.gmra.mrb[0].mxu0 %v842
    %v844 = vpop.f32.mrb[0].mxu0
    %v845 = vadd.f32 %v723, %v844
    %v846 = vpop.f32.mrb[0].mxu0
    %v847 = vadd.f32 %v725, %v846
    %848 = vdwg.mxu0
    %v849 = vand.u32 %v51, 4294901760
    %v850 = vsub.f32 %v51, %v849
    %851 = vmatprep.subr.mxu0 %v850
    %v852 = vand.u32 %v50, 4294901760
    %v853 = vsub.f32 %v50, %v852
    %854 = vmatpush1.msra.mxu0 %v853
    %v855 = vand.u32 %v55, 4294901760
    %v856 = vsub.f32 %v55, %v855
    %857 = vmatprep.subr.mxu0 %v856
    %v858 = vand.u32 %v54, 4294901760
    %v859 = vsub.f32 %v54, %v858
    %860 = vmatpush1.msra.mxu0 %v859
    %v861 = vand.u32 %v59, 4294901760
    %v862 = vsub.f32 %v59, %v861
    %863 = vmatprep.subr.mxu0 %v862
    %v864 = vand.u32 %v58, 4294901760
    %v865 = vsub.f32 %v58, %v864
    %866 = vmatpush1.msra.mxu0 %v865
    %v867 = vand.u32 %v63, 4294901760
    %v868 = vsub.f32 %v63, %v867
    %869 = vmatprep.subr.mxu0 %v868
    %v870 = vand.u32 %v62, 4294901760
    %v871 = vsub.f32 %v62, %v870
    %872 = vmatpush1.msra.mxu0 %v871
    %v873 = vand.u32 %v67, 4294901760
    %v874 = vsub.f32 %v67, %v873
    %875 = vmatprep.subr.mxu0 %v874
    %v876 = vand.u32 %v66, 4294901760
    %v877 = vsub.f32 %v66, %v876
    %878 = vmatpush1.msra.mxu0 %v877
    %879 = vmatprep.subr.mxu0 0.0
    %880 = vmatpush1.msra.mxu0 0.0
    %881 = vmatprep.subr.mxu0 0.0
    %882 = vmatpush1.msra.mxu0 0.0
    %883 = vmatprep.subr.mxu0 0.0
    %884 = vmatpush1.msra.mxu0 0.0
    %885 = vmatprep.subr.mxu0 0.0
    %886 = vmatpush1.msra.mxu0 0.0
    %887 = vmatprep.subr.mxu0 0.0
    %888 = vmatpush1.msra.mxu0 0.0
    %889 = vmatprep.subr.mxu0 0.0
    %890 = vmatpush1.msra.mxu0 0.0
    %891 = vmatprep.subr.mxu0 0.0
    %892 = vmatpush1.msra.mxu0 0.0
    %893 = vmatprep.subr.mxu0 0.0
    %894 = vmatpush1.msra.mxu0 0.0
    %895 = vmatprep.subr.mxu0 0.0
    %896 = vmatpush1.msra.mxu0 0.0
    %897 = vmatprep.subr.mxu0 0.0
    %898 = vmatpush1.msra.mxu0 0.0
    %899 = vmatprep.subr.mxu0 0.0
    %900 = vmatpush1.msra.mxu0 0.0
    %901 = vmatprep.subr.mxu0 0.0
    %902 = vmatpush1.msra.mxu0 0.0
    %903 = vmatprep.subr.mxu0 0.0
    %904 = vmatpush1.msra.mxu0 0.0
    %905 = vmatprep.subr.mxu0 0.0
    %906 = vmatpush1.msra.mxu0 0.0
    %907 = vmatprep.subr.mxu0 0.0
    %908 = vmatpush1.msra.mxu0 0.0
    %909 = vmatprep.subr.mxu0 0.0
    %910 = vmatpush1.msra.mxu0 0.0
    %911 = vmatprep.subr.mxu0 0.0
    %912 = vmatpush1.msra.mxu0 0.0
    %913 = vmatprep.subr.mxu0 0.0
    %914 = vmatpush1.msra.mxu0 0.0
    %915 = vmatprep.subr.mxu0 0.0
    %916 = vmatpush1.msra.mxu0 0.0
    %917 = vmatprep.subr.mxu0 0.0
    %918 = vmatpush1.msra.mxu0 0.0
    %919 = vmatprep.subr.mxu0 0.0
    %920 = vmatpush1.msra.mxu0 0.0
    %921 = vmatprep.subr.mxu0 0.0
    %922 = vmatpush1.msra.mxu0 0.0
    %923 = vmatprep.subr.mxu0 0.0
    %924 = vmatpush1.msra.mxu0 0.0
    %925 = vmatprep.subr.mxu0 0.0
    %926 = vmatpush1.msra.mxu0 0.0
    %927 = vmatprep.subr.mxu0 0.0
    %928 = vmatpush1.msra.mxu0 0.0
    %929 = vmatprep.subr.mxu0 0.0
    %930 = vmatpush1.msra.mxu0 0.0
    %931 = vmatprep.subr.mxu0 0.0
    %932 = vmatpush1.msra.mxu0 0.0
    %933 = vmatprep.mubr.f32.mxu0 0.0
    %v934 = vand.u32 %v70, 4294901760
    %v935 = vsub.f32 %v70, %v934
    %936 = vmatmul.mubr.f32.gmra.mrb[0].mxu0 %v935
    %v937 = vpop.f32.mrb[0].mxu0
    %v938 = vadd.f32 %v845, %v937
    %v939 = vpop.f32.mrb[0].mxu0
    %v940 = vadd.f32 %v847, %v939
    %941 = vdwg.mxu0
    %v942 = vand.u32 %v51, 4294901760
    %943 = vmatprep.subr.mxu0 %v942
    %v944 = vand.u32 %v50, 4294901760
    %945 = vmatpush1.msra.mxu0 %v944
    %v946 = vand.u32 %v55, 4294901760
    %947 = vmatprep.subr.mxu0 %v946
    %v948 = vand.u32 %v54, 4294901760
    %949 = vmatpush1.msra.mxu0 %v948
    %v950 = vand.u32 %v59, 4294901760
    %951 = vmatprep.subr.mxu0 %v950
    %v952 = vand.u32 %v58, 4294901760
    %953 = vmatpush1.msra.mxu0 %v952
    %v954 = vand.u32 %v63, 4294901760
    %955 = vmatprep.subr.mxu0 %v954
    %v956 = vand.u32 %v62, 4294901760
    %957 = vmatpush1.msra.mxu0 %v956
    %v958 = vand.u32 %v67, 4294901760
    %959 = vmatprep.subr.mxu0 %v958
    %v960 = vand.u32 %v66, 4294901760
    %961 = vmatpush1.msra.mxu0 %v960
    %962 = vmatprep.subr.mxu0 0.0
    %963 = vmatpush1.msra.mxu0 0.0
    %964 = vmatprep.subr.mxu0 0.0
    %965 = vmatpush1.msra.mxu0 0.0
    %966 = vmatprep.subr.mxu0 0.0
    %967 = vmatpush1.msra.mxu0 0.0
    %968 = vmatprep.subr.mxu0 0.0
    %969 = vmatpush1.msra.mxu0 0.0
    %970 = vmatprep.subr.mxu0 0.0
    %971 = vmatpush1.msra.mxu0 0.0
    %972 = vmatprep.subr.mxu0 0.0
    %973 = vmatpush1.msra.mxu0 0.0
    %974 = vmatprep.subr.mxu0 0.0
    %975 = vmatpush1.msra.mxu0 0.0
    %976 = vmatprep.subr.mxu0 0.0
    %977 = vmatpush1.msra.mxu0 0.0
    %978 = vmatprep.subr.mxu0 0.0
    %979 = vmatpush1.msra.mxu0 0.0
    %980 = vmatprep.subr.mxu0 0.0
    %981 = vmatpush1.msra.mxu0 0.0
    %982 = vmatprep.subr.mxu0 0.0
    %983 = vmatpush1.msra.mxu0 0.0
    %984 = vmatprep.subr.mxu0 0.0
    %985 = vmatpush1.msra.mxu0 0.0
    %986 = vmatprep.subr.mxu0 0.0
    %987 = vmatpush1.msra.mxu0 0.0
    %988 = vmatprep.subr.mxu0 0.0
    %989 = vmatpush1.msra.mxu0 0.0
    %990 = vmatprep.subr.mxu0 0.0
    %991 = vmatpush1.msra.mxu0 0.0
    %992 = vmatprep.subr.mxu0 0.0
    %993 = vmatpush1.msra.mxu0 0.0
    %994 = vmatprep.subr.mxu0 0.0
    %995 = vmatpush1.msra.mxu0 0.0
    %996 = vmatprep.subr.mxu0 0.0
    %997 = vmatpush1.msra.mxu0 0.0
    %998 = vmatprep.subr.mxu0 0.0
    %999 = vmatpush1.msra.mxu0 0.0
    %1000 = vmatprep.subr.mxu0 0.0
    %1001 = vmatpush1.msra.mxu0 0.0
    %1002 = vmatprep.subr.mxu0 0.0
    %1003 = vmatpush1.msra.mxu0 0.0
    %1004 = vmatprep.subr.mxu0 0.0
    %1005 = vmatpush1.msra.mxu0 0.0
    %1006 = vmatprep.subr.mxu0 0.0
    %1007 = vmatpush1.msra.mxu0 0.0
    %1008 = vmatprep.subr.mxu0 0.0
    %1009 = vmatpush1.msra.mxu0 0.0
    %1010 = vmatprep.subr.mxu0 0.0
    %1011 = vmatpush1.msra.mxu0 0.0
    %1012 = vmatprep.subr.mxu0 0.0
    %1013 = vmatpush1.msra.mxu0 0.0
    %1014 = vmatprep.subr.mxu0 0.0
    %1015 = vmatpush1.msra.mxu0 0.0
    %1016 = vmatprep.mubr.f32.mxu0 0.0
    %v1017 = vand.u32 %v70, 4294901760
    %v1018 = vsub.f32 %v70, %v1017
    %v1019 = vand.u32 %v1018, 4294901760
    %1020 = vmatmul.mubr.f32.gmra.mrb[0].mxu0 %v1019
    %v1021 = vpop.f32.mrb[0].mxu0
    %v1022 = vadd.f32 %v938, %v1021
    %v1023 = vpop.f32.mrb[0].mxu0
    %v1024 = vadd.f32 %v940, %v1023
    %1025 = vdwg.mxu0
    %v1026 = vand.u32 %v51, 4294901760
    %v1027 = vsub.f32 %v51, %v1026
    %v1028 = vand.u32 %v1027, 4294901760
    %1029 = vmatprep.subr.mxu0 %v1028
    %v1030 = vand.u32 %v50, 4294901760
    %v1031 = vsub.f32 %v50, %v1030
    %v1032 = vand.u32 %v1031, 4294901760
    %1033 = vmatpush1.msra.mxu0 %v1032
    %v1034 = vand.u32 %v55, 4294901760
    %v1035 = vsub.f32 %v55, %v1034
    %v1036 = vand.u32 %v1035, 4294901760
    %1037 = vmatprep.subr.mxu0 %v1036
    %v1038 = vand.u32 %v54, 4294901760
    %v1039 = vsub.f32 %v54, %v1038
    %v1040 = vand.u32 %v1039, 4294901760
    %1041 = vmatpush1.msra.mxu0 %v1040
    %v1042 = vand.u32 %v59, 4294901760
    %v1043 = vsub.f32 %v59, %v1042
    %v1044 = vand.u32 %v1043, 4294901760
    %1045 = vmatprep.subr.mxu0 %v1044
    %v1046 = vand.u32 %v58, 4294901760
    %v1047 = vsub.f32 %v58, %v1046
    %v1048 = vand.u32 %v1047, 4294901760
    %1049 = vmatpush1.msra.mxu0 %v1048
    %v1050 = vand.u32 %v63, 4294901760
    %v1051 = vsub.f32 %v63, %v1050
    %v1052 = vand.u32 %v1051, 4294901760
    %1053 = vmatprep.subr.mxu0 %v1052
    %v1054 = vand.u32 %v62, 4294901760
    %v1055 = vsub.f32 %v62, %v1054
    %v1056 = vand.u32 %v1055, 4294901760
    %1057 = vmatpush1.msra.mxu0 %v1056
    %v1058 = vand.u32 %v67, 4294901760
    %v1059 = vsub.f32 %v67, %v1058
    %v1060 = vand.u32 %v1059, 4294901760
    %1061 = vmatprep.subr.mxu0 %v1060
    %v1062 = vand.u32 %v66, 4294901760
    %v1063 = vsub.f32 %v66, %v1062
    %v1064 = vand.u32 %v1063, 4294901760
    %1065 = vmatpush1.msra.mxu0 %v1064
    %1066 = vmatprep.subr.mxu0 0.0
    %1067 = vmatpush1.msra.mxu0 0.0
    %1068 = vmatprep.subr.mxu0 0.0
    %1069 = vmatpush1.msra.mxu0 0.0
    %1070 = vmatprep.subr.mxu0 0.0
    %1071 = vmatpush1.msra.mxu0 0.0
    %1072 = vmatprep.subr.mxu0 0.0
    %1073 = vmatpush1.msra.mxu0 0.0
    %1074 = vmatprep.subr.mxu0 0.0
    %1075 = vmatpush1.msra.mxu0 0.0
    %1076 = vmatprep.subr.mxu0 0.0
    %1077 = vmatpush1.msra.mxu0 0.0
    %1078 = vmatprep.subr.mxu0 0.0
    %1079 = vmatpush1.msra.mxu0 0.0
    %1080 = vmatprep.subr.mxu0 0.0
    %1081 = vmatpush1.msra.mxu0 0.0
    %1082 = vmatprep.subr.mxu0 0.0
    %1083 = vmatpush1.msra.mxu0 0.0
    %1084 = vmatprep.subr.mxu0 0.0
    %1085 = vmatpush1.msra.mxu0 0.0
    %1086 = vmatprep.subr.mxu0 0.0
    %1087 = vmatpush1.msra.mxu0 0.0
    %1088 = vmatprep.subr.mxu0 0.0
    %1089 = vmatpush1.msra.mxu0 0.0
    %1090 = vmatprep.subr.mxu0 0.0
    %1091 = vmatpush1.msra.mxu0 0.0
    %1092 = vmatprep.subr.mxu0 0.0
    %1093 = vmatpush1.msra.mxu0 0.0
    %1094 = vmatprep.subr.mxu0 0.0
    %1095 = vmatpush1.msra.mxu0 0.0
    %1096 = vmatprep.subr.mxu0 0.0
    %1097 = vmatpush1.msra.mxu0 0.0
    %1098 = vmatprep.subr.mxu0 0.0
    %1099 = vmatpush1.msra.mxu0 0.0
    %1100 = vmatprep.subr.mxu0 0.0
    %1101 = vmatpush1.msra.mxu0 0.0
    %1102 = vmatprep.subr.mxu0 0.0
    %1103 = vmatpush1.msra.mxu0 0.0
    %1104 = vmatprep.subr.mxu0 0.0
    %1105 = vmatpush1.msra.mxu0 0.0
    %1106 = vmatprep.subr.mxu0 0.0
    %1107 = vmatpush1.msra.mxu0 0.0
    %1108 = vmatprep.subr.mxu0 0.0
    %1109 = vmatpush1.msra.mxu0 0.0
    %1110 = vmatprep.subr.mxu0 0.0
    %1111 = vmatpush1.msra.mxu0 0.0
    %1112 = vmatprep.subr.mxu0 0.0
    %1113 = vmatpush1.msra.mxu0 0.0
    %1114 = vmatprep.subr.mxu0 0.0
    %1115 = vmatpush1.msra.mxu0 0.0
    %1116 = vmatprep.subr.mxu0 0.0
    %1117 = vmatpush1.msra.mxu0 0.0
    %1118 = vmatprep.subr.mxu0 0.0
    %1119 = vmatpush1.msra.mxu0 0.0
    %1120 = vmatprep.mubr.f32.mxu0 0.0
    %v1121 = vand.u32 %v70, 4294901760
    %1122 = vmatmul.mubr.f32.gmra.mrb[0].mxu0 %v1121
    %v1123 = vpop.f32.mrb[0].mxu0
    %v1124 = vadd.f32 %v1022, %v1123
    %v1125 = vpop.f32.mrb[0].mxu0
    %v1126 = vadd.f32 %v1024, %v1125
    %1127 = vdwg.mxu0
    %v1128 = vand.u32 %v51, 4294901760
    %1129 = vmatprep.subr.mxu0 %v1128
    %v1130 = vand.u32 %v50, 4294901760
    %1131 = vmatpush1.msra.mxu0 %v1130
    %v1132 = vand.u32 %v55, 4294901760
    %1133 = vmatprep.subr.mxu0 %v1132
    %v1134 = vand.u32 %v54, 4294901760
    %1135 = vmatpush1.msra.mxu0 %v1134
    %v1136 = vand.u32 %v59, 4294901760
    %1137 = vmatprep.subr.mxu0 %v1136
    %v1138 = vand.u32 %v58, 4294901760
    %1139 = vmatpush1.msra.mxu0 %v1138
    %v1140 = vand.u32 %v63, 4294901760
    %1141 = vmatprep.subr.mxu0 %v1140
    %v1142 = vand.u32 %v62, 4294901760
    %1143 = vmatpush1.msra.mxu0 %v1142
    %v1144 = vand.u32 %v67, 4294901760
    %1145 = vmatprep.subr.mxu0 %v1144
    %v1146 = vand.u32 %v66, 4294901760
    %1147 = vmatpush1.msra.mxu0 %v1146
    %1148 = vmatprep.subr.mxu0 0.0
    %1149 = vmatpush1.msra.mxu0 0.0
    %1150 = vmatprep.subr.mxu0 0.0
    %1151 = vmatpush1.msra.mxu0 0.0
    %1152 = vmatprep.subr.mxu0 0.0
    %1153 = vmatpush1.msra.mxu0 0.0
    %1154 = vmatprep.subr.mxu0 0.0
    %1155 = vmatpush1.msra.mxu0 0.0
    %1156 = vmatprep.subr.mxu0 0.0
    %1157 = vmatpush1.msra.mxu0 0.0
    %1158 = vmatprep.subr.mxu0 0.0
    %1159 = vmatpush1.msra.mxu0 0.0
    %1160 = vmatprep.subr.mxu0 0.0
    %1161 = vmatpush1.msra.mxu0 0.0
    %1162 = vmatprep.subr.mxu0 0.0
    %1163 = vmatpush1.msra.mxu0 0.0
    %1164 = vmatprep.subr.mxu0 0.0
    %1165 = vmatpush1.msra.mxu0 0.0
    %1166 = vmatprep.subr.mxu0 0.0
    %1167 = vmatpush1.msra.mxu0 0.0
    %1168 = vmatprep.subr.mxu0 0.0
    %1169 = vmatpush1.msra.mxu0 0.0
    %1170 = vmatprep.subr.mxu0 0.0
    %1171 = vmatpush1.msra.mxu0 0.0
    %1172 = vmatprep.subr.mxu0 0.0
    %1173 = vmatpush1.msra.mxu0 0.0
    %1174 = vmatprep.subr.mxu0 0.0
    %1175 = vmatpush1.msra.mxu0 0.0
    %1176 = vmatprep.subr.mxu0 0.0
    %1177 = vmatpush1.msra.mxu0 0.0
    %1178 = vmatprep.subr.mxu0 0.0
    %1179 = vmatpush1.msra.mxu0 0.0
    %1180 = vmatprep.subr.mxu0 0.0
    %1181 = vmatpush1.msra.mxu0 0.0
    %1182 = vmatprep.subr.mxu0 0.0
    %1183 = vmatpush1.msra.mxu0 0.0
    %1184 = vmatprep.subr.mxu0 0.0
    %1185 = vmatpush1.msra.mxu0 0.0
    %1186 = vmatprep.subr.mxu0 0.0
    %1187 = vmatpush1.msra.mxu0 0.0
    %1188 = vmatprep.subr.mxu0 0.0
    %1189 = vmatpush1.msra.mxu0 0.0
    %1190 = vmatprep.subr.mxu0 0.0
    %1191 = vmatpush1.msra.mxu0 0.0
    %1192 = vmatprep.subr.mxu0 0.0
    %1193 = vmatpush1.msra.mxu0 0.0
    %1194 = vmatprep.subr.mxu0 0.0
    %1195 = vmatpush1.msra.mxu0 0.0
    %1196 = vmatprep.subr.mxu0 0.0
    %1197 = vmatpush1.msra.mxu0 0.0
    %1198 = vmatprep.subr.mxu0 0.0
    %1199 = vmatpush1.msra.mxu0 0.0
    %1200 = vmatprep.subr.mxu0 0.0
    %1201 = vmatpush1.msra.mxu0 0.0
    %1202 = vmatprep.mubr.f32.mxu0 0.0
    %v1203 = vand.u32 %v70, 4294901760
    %1204 = vmatmul.mubr.f32.gmra.mrb[0].mxu0 %v1203
    %v1205 = vpop.f32.mrb[0].mxu0
    %v1206 = vadd.f32 %v1124, %v1205
    %v1207 = vpop.f32.mrb[0].mxu0
    %v1208 = vadd.f32 %v1126, %v1207
    %1209 = vdwg.mxu0
    %v1210 = vmax.f32 %v639, %v1206
    %v1211 = vmax.f32 %v1210, %v1208
    %v1212 = vld [vmem:[#allocation6] sm:$0xff]
    %v1213 = vld [vmem:[#allocation6 + $0x8] sm:$0xff]
    %v1214 = vld [vmem:[#allocation6 + $0x10] sm:$0xff]
    %v1215 = vld [vmem:[#allocation6 + $0x18] sm:$0xff]
    %v1216 = vld [vmem:[#allocation6 + $0x20] sm:$0xff]
    %v1217 = vld [vmem:[#allocation6 + $0x28] sm:$0xff]
    %v1218 = vld [vmem:[#allocation6 + $0x30] sm:$0xff]
    %v1219 = vld [vmem:[#allocation6 + $0x38] sm:$0xff]
    %v1220 = vld [vmem:[#allocation6 + $0x40] sm:$0xff]
    %v1221 = vld [vmem:[#allocation6 + $0x48] sm:$0xff]
    %v1222 = vld [vmem:[#allocation6 + $0x50] sm:$0xff]
    %v1223 = vld [vmem:[#allocation6 + $0x58] sm:$0xff]
    %v1224 = vld [vmem:[#allocation6 + $0x60] sm:$0xff]
    %v1225 = vld [vmem:[#allocation6 + $0x68] sm:$0xff]
    %v1226 = vld [vmem:[#allocation6 + $0x70] sm:$0xff]
    %v1227 = vld [vmem:[#allocation6 + $0x78] sm:$0xff]
    %1228 = vmatprep.subr.mxu0 0.0
    %v1229 = vand.u32 %v1212, 4294901760
    %1230 = vmatpush1.msra.mxu0 %v1229
    %1231 = vmatprep.subr.mxu0 0.0
    %v1232 = vand.u32 %v1213, 4294901760
    %1233 = vmatpush1.msra.mxu0 %v1232
    %1234 = vmatprep.subr.mxu0 0.0
    %v1235 = vand.u32 %v1214, 4294901760
    %1236 = vmatpush1.msra.mxu0 %v1235
    %1237 = vmatprep.subr.mxu0 0.0
    %v1238 = vand.u32 %v1215, 4294901760
    %1239 = vmatpush1.msra.mxu0 %v1238
    %1240 = vmatprep.subr.mxu0 0.0
    %v1241 = vand.u32 %v1216, 4294901760
    %1242 = vmatpush1.msra.mxu0 %v1241
    %1243 = vmatprep.subr.mxu0 0.0
    %v1244 = vand.u32 %v1217, 4294901760
    %1245 = vmatpush1.msra.mxu0 %v1244
    %1246 = vmatprep.subr.mxu0 0.0
    %v1247 = vand.u32 %v1218, 4294901760
    %1248 = vmatpush1.msra.mxu0 %v1247
    %1249 = vmatprep.subr.mxu0 0.0
    %v1250 = vand.u32 %v1219, 4294901760
    %1251 = vmatpush1.msra.mxu0 %v1250
    %1252 = vmatprep.subr.mxu0 0.0
    %v1253 = vand.u32 %v1220, 4294901760
    %1254 = vmatpush1.msra.mxu0 %v1253
    %1255 = vmatprep.subr.mxu0 0.0
    %v1256 = vand.u32 %v1221, 4294901760
    %1257 = vmatpush1.msra.mxu0 %v1256
    %1258 = vmatprep.subr.mxu0 0.0
    %v1259 = vand.u32 %v1222, 4294901760
    %1260 = vmatpush1.msra.mxu0 %v1259
    %1261 = vmatprep.subr.mxu0 0.0
    %v1262 = vand.u32 %v1223, 4294901760
    %1263 = vmatpush1.msra.mxu0 %v1262
    %1264 = vmatprep.subr.mxu0 0.0
    %v1265 = vand.u32 %v1224, 4294901760
    %1266 = vmatpush1.msra.mxu0 %v1265
    %1267 = vmatprep.subr.mxu0 0.0
    %v1268 = vand.u32 %v1225, 4294901760
    %1269 = vmatpush1.msra.mxu0 %v1268
    %1270 = vmatprep.subr.mxu0 0.0
    %v1271 = vand.u32 %v1226, 4294901760
    %1272 = vmatpush1.msra.mxu0 %v1271
    %1273 = vmatprep.subr.mxu0 0.0
    %v1274 = vand.u32 %v1227, 4294901760
    %1275 = vmatpush1.msra.mxu0 %v1274
    %1276 = vmatprep.subr.mxu0 0.0
    %1277 = vmatpush1.msra.mxu0 0.0
    %1278 = vmatprep.subr.mxu0 0.0
    %1279 = vmatpush1.msra.mxu0 0.0
    %1280 = vmatprep.subr.mxu0 0.0
    %1281 = vmatpush1.msra.mxu0 0.0
    %1282 = vmatprep.subr.mxu0 0.0
    %1283 = vmatpush1.msra.mxu0 0.0
    %1284 = vmatprep.subr.mxu0 0.0
    %1285 = vmatpush1.msra.mxu0 0.0
    %1286 = vmatprep.subr.mxu0 0.0
    %1287 = vmatpush1.msra.mxu0 0.0
    %1288 = vmatprep.subr.mxu0 0.0
    %1289 = vmatpush1.msra.mxu0 0.0
    %1290 = vmatprep.subr.mxu0 0.0
    %1291 = vmatpush1.msra.mxu0 0.0
    %1292 = vmatprep.subr.mxu0 0.0
    %1293 = vmatpush1.msra.mxu0 0.0
    %1294 = vmatprep.subr.mxu0 0.0
    %1295 = vmatpush1.msra.mxu0 0.0
    %1296 = vmatprep.subr.mxu0 0.0
    %1297 = vmatpush1.msra.mxu0 0.0
    %1298 = vmatprep.subr.mxu0 0.0
    %1299 = vmatpush1.msra.mxu0 0.0
    %1300 = vmatprep.subr.mxu0 0.0
    %1301 = vmatpush1.msra.mxu0 0.0
    %1302 = vmatprep.subr.mxu0 0.0
    %1303 = vmatpush1.msra.mxu0 0.0
    %1304 = vmatprep.subr.mxu0 0.0
    %1305 = vmatpush1.msra.mxu0 0.0
    %1306 = vmatprep.subr.mxu0 0.0
    %1307 = vmatpush1.msra.mxu0 0.0
    %1308 = vmatprep.mubr.f32.mxu0 0.0
    %v1309 = vand.u32 %v1211, 4294901760
    %v1310 = vsub.f32 %v1211, %v1309
    %v1311 = vand.u32 %v1310, 4294901760
    %v1312 = vsub.f32 %v1310, %v1311
    %v1313 = vand.u32 %v1312, 4294901760
    %1314 = vmatmul.mubr.f32.gmra.mrb[0].mxu0 %v1313
    %v1315 = vpop.f32.mrb[0].mxu0
    %v1316 = vadd.f32 0.0, %v1315
    %v1317 = vpop.f32.mrb[0].mxu0
    %1318 = vdwg.mxu0
    %1319 = vmatprep.subr.mxu0 0.0
    %v1320 = vand.u32 %v1212, 4294901760
    %v1321 = vsub.f32 %v1212, %v1320
    %v1322 = vand.u32 %v1321, 4294901760
    %v1323 = vsub.f32 %v1321, %v1322
    %v1324 = vand.u32 %v1323, 4294901760
    %1325 = vmatpush1.msra.mxu0 %v1324
    %1326 = vmatprep.subr.mxu0 0.0
    %v1327 = vand.u32 %v1213, 4294901760
    %v1328 = vsub.f32 %v1213, %v1327
    %v1329 = vand.u32 %v1328, 4294901760
    %v1330 = vsub.f32 %v1328, %v1329
    %v1331 = vand.u32 %v1330, 4294901760
    %1332 = vmatpush1.msra.mxu0 %v1331
    %1333 = vmatprep.subr.mxu0 0.0
    %v1334 = vand.u32 %v1214, 4294901760
    %v1335 = vsub.f32 %v1214, %v1334
    %v1336 = vand.u32 %v1335, 4294901760
    %v1337 = vsub.f32 %v1335, %v1336
    %v1338 = vand.u32 %v1337, 4294901760
    %1339 = vmatpush1.msra.mxu0 %v1338
    %1340 = vmatprep.subr.mxu0 0.0
    %v1341 = vand.u32 %v1215, 4294901760
    %v1342 = vsub.f32 %v1215, %v1341
    %v1343 = vand.u32 %v1342, 4294901760
    %v1344 = vsub.f32 %v1342, %v1343
    %v1345 = vand.u32 %v1344, 4294901760
    %1346 = vmatpush1.msra.mxu0 %v1345
    %1347 = vmatprep.subr.mxu0 0.0
    %v1348 = vand.u32 %v1216, 4294901760
    %v1349 = vsub.f32 %v1216, %v1348
    %v1350 = vand.u32 %v1349, 4294901760
    %v1351 = vsub.f32 %v1349, %v1350
    %v1352 = vand.u32 %v1351, 4294901760
    %1353 = vmatpush1.msra.mxu0 %v1352
    %1354 = vmatprep.subr.mxu0 0.0
    %v1355 = vand.u32 %v1217, 4294901760
    %v1356 = vsub.f32 %v1217, %v1355
    %v1357 = vand.u32 %v1356, 4294901760
    %v1358 = vsub.f32 %v1356, %v1357
    %v1359 = vand.u32 %v1358, 4294901760
    %1360 = vmatpush1.msra.mxu0 %v1359
    %1361 = vmatprep.subr.mxu0 0.0
    %v1362 = vand.u32 %v1218, 4294901760
    %v1363 = vsub.f32 %v1218, %v1362
    %v1364 = vand.u32 %v1363, 4294901760
    %v1365 = vsub.f32 %v1363, %v1364
    %v1366 = vand.u32 %v1365, 4294901760
    %1367 = vmatpush1.msra.mxu0 %v1366
    %1368 = vmatprep.subr.mxu0 0.0
    %v1369 = vand.u32 %v1219, 4294901760
    %v1370 = vsub.f32 %v1219, %v1369
    %v1371 = vand.u32 %v1370, 4294901760
    %v1372 = vsub.f32 %v1370, %v1371
    %v1373 = vand.u32 %v1372, 4294901760
    %1374 = vmatpush1.msra.mxu0 %v1373
    %1375 = vmatprep.subr.mxu0 0.0
    %v1376 = vand.u32 %v1220, 4294901760
    %v1377 = vsub.f32 %v1220, %v1376
    %v1378 = vand.u32 %v1377, 4294901760
    %v1379 = vsub.f32 %v1377, %v1378
    %v1380 = vand.u32 %v1379, 4294901760
    %1381 = vmatpush1.msra.mxu0 %v1380
    %1382 = vmatprep.subr.mxu0 0.0
    %v1383 = vand.u32 %v1221, 4294901760
    %v1384 = vsub.f32 %v1221, %v1383
    %v1385 = vand.u32 %v1384, 4294901760
    %v1386 = vsub.f32 %v1384, %v1385
    %v1387 = vand.u32 %v1386, 4294901760
    %1388 = vmatpush1.msra.mxu0 %v1387
    %1389 = vmatprep.subr.mxu0 0.0
    %v1390 = vand.u32 %v1222, 4294901760
    %v1391 = vsub.f32 %v1222, %v1390
    %v1392 = vand.u32 %v1391, 4294901760
    %v1393 = vsub.f32 %v1391, %v1392
    %v1394 = vand.u32 %v1393, 4294901760
    %1395 = vmatpush1.msra.mxu0 %v1394
    %1396 = vmatprep.subr.mxu0 0.0
    %v1397 = vand.u32 %v1223, 4294901760
    %v1398 = vsub.f32 %v1223, %v1397
    %v1399 = vand.u32 %v1398, 4294901760
    %v1400 = vsub.f32 %v1398, %v1399
    %v1401 = vand.u32 %v1400, 4294901760
    %1402 = vmatpush1.msra.mxu0 %v1401
    %1403 = vmatprep.subr.mxu0 0.0
    %v1404 = vand.u32 %v1224, 4294901760
    %v1405 = vsub.f32 %v1224, %v1404
    %v1406 = vand.u32 %v1405, 4294901760
    %v1407 = vsub.f32 %v1405, %v1406
    %v1408 = vand.u32 %v1407, 4294901760
    %1409 = vmatpush1.msra.mxu0 %v1408
    %1410 = vmatprep.subr.mxu0 0.0
    %v1411 = vand.u32 %v1225, 4294901760
    %v1412 = vsub.f32 %v1225, %v1411
    %v1413 = vand.u32 %v1412, 4294901760
    %v1414 = vsub.f32 %v1412, %v1413
    %v1415 = vand.u32 %v1414, 4294901760
    %1416 = vmatpush1.msra.mxu0 %v1415
    %1417 = vmatprep.subr.mxu0 0.0
    %v1418 = vand.u32 %v1226, 4294901760
    %v1419 = vsub.f32 %v1226, %v1418
    %v1420 = vand.u32 %v1419, 4294901760
    %v1421 = vsub.f32 %v1419, %v1420
    %v1422 = vand.u32 %v1421, 4294901760
    %1423 = vmatpush1.msra.mxu0 %v1422
    %1424 = vmatprep.subr.mxu0 0.0
    %v1425 = vand.u32 %v1227, 4294901760
    %v1426 = vsub.f32 %v1227, %v1425
    %v1427 = vand.u32 %v1426, 4294901760
    %v1428 = vsub.f32 %v1426, %v1427
    %v1429 = vand.u32 %v1428, 4294901760
    %1430 = vmatpush1.msra.mxu0 %v1429
    %1431 = vmatprep.subr.mxu0 0.0
    %1432 = vmatpush1.msra.mxu0 0.0
    %1433 = vmatprep.subr.mxu0 0.0
    %1434 = vmatpush1.msra.mxu0 0.0
    %1435 = vmatprep.subr.mxu0 0.0
    %1436 = vmatpush1.msra.mxu0 0.0
    %1437 = vmatprep.subr.mxu0 0.0
    %1438 = vmatpush1.msra.mxu0 0.0
    %1439 = vmatprep.subr.mxu0 0.0
    %1440 = vmatpush1.msra.mxu0 0.0
    %1441 = vmatprep.subr.mxu0 0.0
    %1442 = vmatpush1.msra.mxu0 0.0
    %1443 = vmatprep.subr.mxu0 0.0
    %1444 = vmatpush1.msra.mxu0 0.0
    %1445 = vmatprep.subr.mxu0 0.0
    %1446 = vmatpush1.msra.mxu0 0.0
    %1447 = vmatprep.subr.mxu0 0.0
    %1448 = vmatpush1.msra.mxu0 0.0
    %1449 = vmatprep.subr.mxu0 0.0
    %1450 = vmatpush1.msra.mxu0 0.0
    %1451 = vmatprep.subr.mxu0 0.0
    %1452 = vmatpush1.msra.mxu0 0.0
    %1453 = vmatprep.subr.mxu0 0.0
    %1454 = vmatpush1.msra.mxu0 0.0
    %1455 = vmatprep.subr.mxu0 0.0
    %1456 = vmatpush1.msra.mxu0 0.0
    %1457 = vmatprep.subr.mxu0 0.0
    %1458 = vmatpush1.msra.mxu0 0.0
    %1459 = vmatprep.subr.mxu0 0.0
    %1460 = vmatpush1.msra.mxu0 0.0
    %1461 = vmatprep.subr.mxu0 0.0
    %1462 = vmatpush1.msra.mxu0 0.0
    %1463 = vmatprep.mubr.f32.mxu0 0.0
    %v1464 = vand.u32 %v1211, 4294901760
    %1465 = vmatmul.mubr.f32.gmra.mrb[0].mxu0 %v1464
    %v1466 = vpop.f32.mrb[0].mxu0
    %v1467 = vadd.f32 %v1316, %v1466
    %v1468 = vpop.f32.mrb[0].mxu0
    %1469 = vdwg.mxu0
    %1470 = vmatprep.subr.mxu0 0.0
    %v1471 = vand.u32 %v1212, 4294901760
    %v1472 = vsub.f32 %v1212, %v1471
    %1473 = vmatpush1.msra.mxu0 %v1472
    %1474 = vmatprep.subr.mxu0 0.0
    %v1475 = vand.u32 %v1213, 4294901760
    %v1476 = vsub.f32 %v1213, %v1475
    %1477 = vmatpush1.msra.mxu0 %v1476
    %1478 = vmatprep.subr.mxu0 0.0
    %v1479 = vand.u32 %v1214, 4294901760
    %v1480 = vsub.f32 %v1214, %v1479
    %1481 = vmatpush1.msra.mxu0 %v1480
    %1482 = vmatprep.subr.mxu0 0.0
    %v1483 = vand.u32 %v1215, 4294901760
    %v1484 = vsub.f32 %v1215, %v1483
    %1485 = vmatpush1.msra.mxu0 %v1484
    %1486 = vmatprep.subr.mxu0 0.0
    %v1487 = vand.u32 %v1216, 4294901760
    %v1488 = vsub.f32 %v1216, %v1487
    %1489 = vmatpush1.msra.mxu0 %v1488
    %1490 = vmatprep.subr.mxu0 0.0
    %v1491 = vand.u32 %v1217, 4294901760
    %v1492 = vsub.f32 %v1217, %v1491
    %1493 = vmatpush1.msra.mxu0 %v1492
    %1494 = vmatprep.subr.mxu0 0.0
    %v1495 = vand.u32 %v1218, 4294901760
    %v1496 = vsub.f32 %v1218, %v1495
    %1497 = vmatpush1.msra.mxu0 %v1496
    %1498 = vmatprep.subr.mxu0 0.0
    %v1499 = vand.u32 %v1219, 4294901760
    %v1500 = vsub.f32 %v1219, %v1499
    %1501 = vmatpush1.msra.mxu0 %v1500
    %1502 = vmatprep.subr.mxu0 0.0
    %v1503 = vand.u32 %v1220, 4294901760
    %v1504 = vsub.f32 %v1220, %v1503
    %1505 = vmatpush1.msra.mxu0 %v1504
    %1506 = vmatprep.subr.mxu0 0.0
    %v1507 = vand.u32 %v1221, 4294901760
    %v1508 = vsub.f32 %v1221, %v1507
    %1509 = vmatpush1.msra.mxu0 %v1508
    %1510 = vmatprep.subr.mxu0 0.0
    %v1511 = vand.u32 %v1222, 4294901760
    %v1512 = vsub.f32 %v1222, %v1511
    %1513 = vmatpush1.msra.mxu0 %v1512
    %1514 = vmatprep.subr.mxu0 0.0
    %v1515 = vand.u32 %v1223, 4294901760
    %v1516 = vsub.f32 %v1223, %v1515
    %1517 = vmatpush1.msra.mxu0 %v1516
    %1518 = vmatprep.subr.mxu0 0.0
    %v1519 = vand.u32 %v1224, 4294901760
    %v1520 = vsub.f32 %v1224, %v1519
    %1521 = vmatpush1.msra.mxu0 %v1520
    %1522 = vmatprep.subr.mxu0 0.0
    %v1523 = vand.u32 %v1225, 4294901760
    %v1524 = vsub.f32 %v1225, %v1523
    %1525 = vmatpush1.msra.mxu0 %v1524
    %1526 = vmatprep.subr.mxu0 0.0
    %v1527 = vand.u32 %v1226, 4294901760
    %v1528 = vsub.f32 %v1226, %v1527
    %1529 = vmatpush1.msra.mxu0 %v1528
    %1530 = vmatprep.subr.mxu0 0.0
    %v1531 = vand.u32 %v1227, 4294901760
    %v1532 = vsub.f32 %v1227, %v1531
    %1533 = vmatpush1.msra.mxu0 %v1532
    %1534 = vmatprep.subr.mxu0 0.0
    %1535 = vmatpush1.msra.mxu0 0.0
    %1536 = vmatprep.subr.mxu0 0.0
    %1537 = vmatpush1.msra.mxu0 0.0
    %1538 = vmatprep.subr.mxu0 0.0
    %1539 = vmatpush1.msra.mxu0 0.0
    %1540 = vmatprep.subr.mxu0 0.0
    %1541 = vmatpush1.msra.mxu0 0.0
    %1542 = vmatprep.subr.mxu0 0.0
    %1543 = vmatpush1.msra.mxu0 0.0
    %1544 = vmatprep.subr.mxu0 0.0
    %1545 = vmatpush1.msra.mxu0 0.0
    %1546 = vmatprep.subr.mxu0 0.0
    %1547 = vmatpush1.msra.mxu0 0.0
    %1548 = vmatprep.subr.mxu0 0.0
    %1549 = vmatpush1.msra.mxu0 0.0
    %1550 = vmatprep.subr.mxu0 0.0
    %1551 = vmatpush1.msra.mxu0 0.0
    %1552 = vmatprep.subr.mxu0 0.0
    %1553 = vmatpush1.msra.mxu0 0.0
    %1554 = vmatprep.subr.mxu0 0.0
    %1555 = vmatpush1.msra.mxu0 0.0
    %1556 = vmatprep.subr.mxu0 0.0
    %1557 = vmatpush1.msra.mxu0 0.0
    %1558 = vmatprep.subr.mxu0 0.0
    %1559 = vmatpush1.msra.mxu0 0.0
    %1560 = vmatprep.subr.mxu0 0.0
    %1561 = vmatpush1.msra.mxu0 0.0
    %1562 = vmatprep.subr.mxu0 0.0
    %1563 = vmatpush1.msra.mxu0 0.0
    %1564 = vmatprep.subr.mxu0 0.0
    %1565 = vmatpush1.msra.mxu0 0.0
    %1566 = vmatprep.mubr.f32.mxu0 0.0
    %v1567 = vand.u32 %v1211, 4294901760
    %v1568 = vsub.f32 %v1211, %v1567
    %1569 = vmatmul.mubr.f32.gmra.mrb[0].mxu0 %v1568
    %v1570 = vpop.f32.mrb[0].mxu0
    %v1571 = vadd.f32 %v1467, %v1570
    %v1572 = vpop.f32.mrb[0].mxu0
    %1573 = vdwg.mxu0
    %1574 = vmatprep.subr.mxu0 0.0
    %v1575 = vand.u32 %v1212, 4294901760
    %1576 = vmatpush1.msra.mxu0 %v1575
    %1577 = vmatprep.subr.mxu0 0.0
    %v1578 = vand.u32 %v1213, 4294901760
    %1579 = vmatpush1.msra.mxu0 %v1578
    %1580 = vmatprep.subr.mxu0 0.0
    %v1581 = vand.u32 %v1214, 4294901760
    %1582 = vmatpush1.msra.mxu0 %v1581
    %1583 = vmatprep.subr.mxu0 0.0
    %v1584 = vand.u32 %v1215, 4294901760
    %1585 = vmatpush1.msra.mxu0 %v1584
    %1586 = vmatprep.subr.mxu0 0.0
    %v1587 = vand.u32 %v1216, 4294901760
    %1588 = vmatpush1.msra.mxu0 %v1587
    %1589 = vmatprep.subr.mxu0 0.0
    %v1590 = vand.u32 %v1217, 4294901760
    %1591 = vmatpush1.msra.mxu0 %v1590
    %1592 = vmatprep.subr.mxu0 0.0
    %v1593 = vand.u32 %v1218, 4294901760
    %1594 = vmatpush1.msra.mxu0 %v1593
    %1595 = vmatprep.subr.mxu0 0.0
    %v1596 = vand.u32 %v1219, 4294901760
    %1597 = vmatpush1.msra.mxu0 %v1596
    %1598 = vmatprep.subr.mxu0 0.0
    %v1599 = vand.u32 %v1220, 4294901760
    %1600 = vmatpush1.msra.mxu0 %v1599
    %1601 = vmatprep.subr.mxu0 0.0
    %v1602 = vand.u32 %v1221, 4294901760
    %1603 = vmatpush1.msra.mxu0 %v1602
    %1604 = vmatprep.subr.mxu0 0.0
    %v1605 = vand.u32 %v1222, 4294901760
    %1606 = vmatpush1.msra.mxu0 %v1605
    %1607 = vmatprep.subr.mxu0 0.0
    %v1608 = vand.u32 %v1223, 4294901760
    %1609 = vmatpush1.msra.mxu0 %v1608
    %1610 = vmatprep.subr.mxu0 0.0
    %v1611 = vand.u32 %v1224, 4294901760
    %1612 = vmatpush1.msra.mxu0 %v1611
    %1613 = vmatprep.subr.mxu0 0.0
    %v1614 = vand.u32 %v1225, 4294901760
    %1615 = vmatpush1.msra.mxu0 %v1614
    %1616 = vmatprep.subr.mxu0 0.0
    %v1617 = vand.u32 %v1226, 4294901760
    %1618 = vmatpush1.msra.mxu0 %v1617
    %1619 = vmatprep.subr.mxu0 0.0
    %v1620 = vand.u32 %v1227, 4294901760
    %1621 = vmatpush1.msra.mxu0 %v1620
    %1622 = vmatprep.subr.mxu0 0.0
    %1623 = vmatpush1.msra.mxu0 0.0
    %1624 = vmatprep.subr.mxu0 0.0
    %1625 = vmatpush1.msra.mxu0 0.0
    %1626 = vmatprep.subr.mxu0 0.0
    %1627 = vmatpush1.msra.mxu0 0.0
    %1628 = vmatprep.subr.mxu0 0.0
    %1629 = vmatpush1.msra.mxu0 0.0
    %1630 = vmatprep.subr.mxu0 0.0
    %1631 = vmatpush1.msra.mxu0 0.0
    %1632 = vmatprep.subr.mxu0 0.0
    %1633 = vmatpush1.msra.mxu0 0.0
    %1634 = vmatprep.subr.mxu0 0.0
    %1635 = vmatpush1.msra.mxu0 0.0
    %1636 = vmatprep.subr.mxu0 0.0
    %1637 = vmatpush1.msra.mxu0 0.0
    %1638 = vmatprep.subr.mxu0 0.0
    %1639 = vmatpush1.msra.mxu0 0.0
    %1640 = vmatprep.subr.mxu0 0.0
    %1641 = vmatpush1.msra.mxu0 0.0
    %1642 = vmatprep.subr.mxu0 0.0
    %1643 = vmatpush1.msra.mxu0 0.0
    %1644 = vmatprep.subr.mxu0 0.0
    %1645 = vmatpush1.msra.mxu0 0.0
    %1646 = vmatprep.subr.mxu0 0.0
    %1647 = vmatpush1.msra.mxu0 0.0
    %1648 = vmatprep.subr.mxu0 0.0
    %1649 = vmatpush1.msra.mxu0 0.0
    %1650 = vmatprep.subr.mxu0 0.0
    %1651 = vmatpush1.msra.mxu0 0.0
    %1652 = vmatprep.subr.mxu0 0.0
    %1653 = vmatpush1.msra.mxu0 0.0
    %1654 = vmatprep.mubr.f32.mxu0 0.0
    %v1655 = vand.u32 %v1211, 4294901760
    %v1656 = vsub.f32 %v1211, %v1655
    %v1657 = vand.u32 %v1656, 4294901760
    %1658 = vmatmul.mubr.f32.gmra.mrb[0].mxu0 %v1657
    %v1659 = vpop.f32.mrb[0].mxu0
    %v1660 = vadd.f32 %v1571, %v1659
    %v1661 = vpop.f32.mrb[0].mxu0
    %1662 = vdwg.mxu0
    %1663 = vmatprep.subr.mxu0 0.0
    %v1664 = vand.u32 %v1212, 4294901760
    %v1665 = vsub.f32 %v1212, %v1664
    %v1666 = vand.u32 %v1665, 4294901760
    %1667 = vmatpush1.msra.mxu0 %v1666
    %1668 = vmatprep.subr.mxu0 0.0
    %v1669 = vand.u32 %v1213, 4294901760
    %v1670 = vsub.f32 %v1213, %v1669
    %v1671 = vand.u32 %v1670, 4294901760
    %1672 = vmatpush1.msra.mxu0 %v1671
    %1673 = vmatprep.subr.mxu0 0.0
    %v1674 = vand.u32 %v1214, 4294901760
    %v1675 = vsub.f32 %v1214, %v1674
    %v1676 = vand.u32 %v1675, 4294901760
    %1677 = vmatpush1.msra.mxu0 %v1676
    %1678 = vmatprep.subr.mxu0 0.0
    %v1679 = vand.u32 %v1215, 4294901760
    %v1680 = vsub.f32 %v1215, %v1679
    %v1681 = vand.u32 %v1680, 4294901760
    %1682 = vmatpush1.msra.mxu0 %v1681
    %1683 = vmatprep.subr.mxu0 0.0
    %v1684 = vand.u32 %v1216, 4294901760
    %v1685 = vsub.f32 %v1216, %v1684
    %v1686 = vand.u32 %v1685, 4294901760
    %1687 = vmatpush1.msra.mxu0 %v1686
    %1688 = vmatprep.subr.mxu0 0.0
    %v1689 = vand.u32 %v1217, 4294901760
    %v1690 = vsub.f32 %v1217, %v1689
    %v1691 = vand.u32 %v1690, 4294901760
    %1692 = vmatpush1.msra.mxu0 %v1691
    %1693 = vmatprep.subr.mxu0 0.0
    %v1694 = vand.u32 %v1218, 4294901760
    %v1695 = vsub.f32 %v1218, %v1694
    %v1696 = vand.u32 %v1695, 4294901760
    %1697 = vmatpush1.msra.mxu0 %v1696
    %1698 = vmatprep.subr.mxu0 0.0
    %v1699 = vand.u32 %v1219, 4294901760
    %v1700 = vsub.f32 %v1219, %v1699
    %v1701 = vand.u32 %v1700, 4294901760
    %1702 = vmatpush1.msra.mxu0 %v1701
    %1703 = vmatprep.subr.mxu0 0.0
    %v1704 = vand.u32 %v1220, 4294901760
    %v1705 = vsub.f32 %v1220, %v1704
    %v1706 = vand.u32 %v1705, 4294901760
    %1707 = vmatpush1.msra.mxu0 %v1706
    %1708 = vmatprep.subr.mxu0 0.0
    %v1709 = vand.u32 %v1221, 4294901760
    %v1710 = vsub.f32 %v1221, %v1709
    %v1711 = vand.u32 %v1710, 4294901760
    %1712 = vmatpush1.msra.mxu0 %v1711
    %1713 = vmatprep.subr.mxu0 0.0
    %v1714 = vand.u32 %v1222, 4294901760
    %v1715 = vsub.f32 %v1222, %v1714
    %v1716 = vand.u32 %v1715, 4294901760
    %1717 = vmatpush1.msra.mxu0 %v1716
    %1718 = vmatprep.subr.mxu0 0.0
    %v1719 = vand.u32 %v1223, 4294901760
    %v1720 = vsub.f32 %v1223, %v1719
    %v1721 = vand.u32 %v1720, 4294901760
    %1722 = vmatpush1.msra.mxu0 %v1721
    %1723 = vmatprep.subr.mxu0 0.0
    %v1724 = vand.u32 %v1224, 4294901760
    %v1725 = vsub.f32 %v1224, %v1724
    %v1726 = vand.u32 %v1725, 4294901760
    %1727 = vmatpush1.msra.mxu0 %v1726
    %1728 = vmatprep.subr.mxu0 0.0
    %v1729 = vand.u32 %v1225, 4294901760
    %v1730 = vsub.f32 %v1225, %v1729
    %v1731 = vand.u32 %v1730, 4294901760
    %1732 = vmatpush1.msra.mxu0 %v1731
    %1733 = vmatprep.subr.mxu0 0.0
    %v1734 = vand.u32 %v1226, 4294901760
    %v1735 = vsub.f32 %v1226, %v1734
    %v1736 = vand.u32 %v1735, 4294901760
    %1737 = vmatpush1.msra.mxu0 %v1736
    %1738 = vmatprep.subr.mxu0 0.0
    %v1739 = vand.u32 %v1227, 4294901760
    %v1740 = vsub.f32 %v1227, %v1739
    %v1741 = vand.u32 %v1740, 4294901760
    %1742 = vmatpush1.msra.mxu0 %v1741
    %1743 = vmatprep.subr.mxu0 0.0
    %1744 = vmatpush1.msra.mxu0 0.0
    %1745 = vmatprep.subr.mxu0 0.0
    %1746 = vmatpush1.msra.mxu0 0.0
    %1747 = vmatprep.subr.mxu0 0.0
    %1748 = vmatpush1.msra.mxu0 0.0
    %1749 = vmatprep.subr.mxu0 0.0
    %1750 = vmatpush1.msra.mxu0 0.0
    %1751 = vmatprep.subr.mxu0 0.0
    %1752 = vmatpush1.msra.mxu0 0.0
    %1753 = vmatprep.subr.mxu0 0.0
    %1754 = vmatpush1.msra.mxu0 0.0
    %1755 = vmatprep.subr.mxu0 0.0
    %1756 = vmatpush1.msra.mxu0 0.0
    %1757 = vmatprep.subr.mxu0 0.0
    %1758 = vmatpush1.msra.mxu0 0.0
    %1759 = vmatprep.subr.mxu0 0.0
    %1760 = vmatpush1.msra.mxu0 0.0
    %1761 = vmatprep.subr.mxu0 0.0
    %1762 = vmatpush1.msra.mxu0 0.0
    %1763 = vmatprep.subr.mxu0 0.0
    %1764 = vmatpush1.msra.mxu0 0.0
    %1765 = vmatprep.subr.mxu0 0.0
    %1766 = vmatpush1.msra.mxu0 0.0
    %1767 = vmatprep.subr.mxu0 0.0
    %1768 = vmatpush1.msra.mxu0 0.0
    %1769 = vmatprep.subr.mxu0 0.0
    %1770 = vmatpush1.msra.mxu0 0.0
    %1771 = vmatprep.subr.mxu0 0.0
    %1772 = vmatpush1.msra.mxu0 0.0
    %1773 = vmatprep.subr.mxu0 0.0
    %1774 = vmatpush1.msra.mxu0 0.0
    %1775 = vmatprep.mubr.f32.mxu0 0.0
    %v1776 = vand.u32 %v1211, 4294901760
    %1777 = vmatmul.mubr.f32.gmra.mrb[0].mxu0 %v1776
    %v1778 = vpop.f32.mrb[0].mxu0
    %v1779 = vadd.f32 %v1660, %v1778
    %v1780 = vpop.f32.mrb[0].mxu0
    %1781 = vdwg.mxu0
    %1782 = vmatprep.subr.mxu0 0.0
    %v1783 = vand.u32 %v1212, 4294901760
    %1784 = vmatpush1.msra.mxu0 %v1783
    %1785 = vmatprep.subr.mxu0 0.0
    %v1786 = vand.u32 %v1213, 4294901760
    %1787 = vmatpush1.msra.mxu0 %v1786
    %1788 = vmatprep.subr.mxu0 0.0
    %v1789 = vand.u32 %v1214, 4294901760
    %1790 = vmatpush1.msra.mxu0 %v1789
    %1791 = vmatprep.subr.mxu0 0.0
    %v1792 = vand.u32 %v1215, 4294901760
    %1793 = vmatpush1.msra.mxu0 %v1792
    %1794 = vmatprep.subr.mxu0 0.0
    %v1795 = vand.u32 %v1216, 4294901760
    %1796 = vmatpush1.msra.mxu0 %v1795
    %1797 = vmatprep.subr.mxu0 0.0
    %v1798 = vand.u32 %v1217, 4294901760
    %1799 = vmatpush1.msra.mxu0 %v1798
    %1800 = vmatprep.subr.mxu0 0.0
    %v1801 = vand.u32 %v1218, 4294901760
    %1802 = vmatpush1.msra.mxu0 %v1801
    %1803 = vmatprep.subr.mxu0 0.0
    %v1804 = vand.u32 %v1219, 4294901760
    %1805 = vmatpush1.msra.mxu0 %v1804
    %1806 = vmatprep.subr.mxu0 0.0
    %v1807 = vand.u32 %v1220, 4294901760
    %1808 = vmatpush1.msra.mxu0 %v1807
    %1809 = vmatprep.subr.mxu0 0.0
    %v1810 = vand.u32 %v1221, 4294901760
    %1811 = vmatpush1.msra.mxu0 %v1810
    %1812 = vmatprep.subr.mxu0 0.0
    %v1813 = vand.u32 %v1222, 4294901760
    %1814 = vmatpush1.msra.mxu0 %v1813
    %1815 = vmatprep.subr.mxu0 0.0
    %v1816 = vand.u32 %v1223, 4294901760
    %1817 = vmatpush1.msra.mxu0 %v1816
    %1818 = vmatprep.subr.mxu0 0.0
    %v1819 = vand.u32 %v1224, 4294901760
    %1820 = vmatpush1.msra.mxu0 %v1819
    %1821 = vmatprep.subr.mxu0 0.0
    %v1822 = vand.u32 %v1225, 4294901760
    %1823 = vmatpush1.msra.mxu0 %v1822
    %1824 = vmatprep.subr.mxu0 0.0
    %v1825 = vand.u32 %v1226, 4294901760
    %1826 = vmatpush1.msra.mxu0 %v1825
    %1827 = vmatprep.subr.mxu0 0.0
    %v1828 = vand.u32 %v1227, 4294901760
    %1829 = vmatpush1.msra.mxu0 %v1828
    %1830 = vmatprep.subr.mxu0 0.0
    %1831 = vmatpush1.msra.mxu0 0.0
    %1832 = vmatprep.subr.mxu0 0.0
    %1833 = vmatpush1.msra.mxu0 0.0
    %1834 = vmatprep.subr.mxu0 0.0
    %1835 = vmatpush1.msra.mxu0 0.0
    %1836 = vmatprep.subr.mxu0 0.0
    %1837 = vmatpush1.msra.mxu0 0.0
    %1838 = vmatprep.subr.mxu0 0.0
    %1839 = vmatpush1.msra.mxu0 0.0
    %1840 = vmatprep.subr.mxu0 0.0
    %1841 = vmatpush1.msra.mxu0 0.0
    %1842 = vmatprep.subr.mxu0 0.0
    %1843 = vmatpush1.msra.mxu0 0.0
    %1844 = vmatprep.subr.mxu0 0.0
    %1845 = vmatpush1.msra.mxu0 0.0
    %1846 = vmatprep.subr.mxu0 0.0
    %1847 = vmatpush1.msra.mxu0 0.0
    %1848 = vmatprep.subr.mxu0 0.0
    %1849 = vmatpush1.msra.mxu0 0.0
    %1850 = vmatprep.subr.mxu0 0.0
    %1851 = vmatpush1.msra.mxu0 0.0
    %1852 = vmatprep.subr.mxu0 0.0
    %1853 = vmatpush1.msra.mxu0 0.0
    %1854 = vmatprep.subr.mxu0 0.0
    %1855 = vmatpush1.msra.mxu0 0.0
    %1856 = vmatprep.subr.mxu0 0.0
    %1857 = vmatpush1.msra.mxu0 0.0
    %1858 = vmatprep.subr.mxu0 0.0
    %1859 = vmatpush1.msra.mxu0 0.0
    %1860 = vmatprep.subr.mxu0 0.0
    %1861 = vmatpush1.msra.mxu0 0.0
    %1862 = vmatprep.mubr.f32.mxu0 0.0
    %v1863 = vand.u32 %v1211, 4294901760
    %1864 = vmatmul.mubr.f32.gmra.mrb[0].mxu0 %v1863
    %v1865 = vpop.f32.mrb[0].mxu0
    %v1866 = vadd.f32 %v1779, %v1865
    %v1867 = vpop.f32.mrb[0].mxu0
    %1868 = vdwg.mxu0
    %v1869 = vadd.f32 %v637, %v1866
    %s1870 = sld [smem:[#allocation2]]
    %v1871 = vstv %s1870
    %v1872 = vadd.f32 %v1869, %v1871
    %1873 = vst [vmem:[#allocation8] sm:$0xff] %v1872
    // Predicated region
    $region26: #{tpu_custom_call.1} parent=1 // pred_check
      _
    $region27: #{tpu_custom_call.1} parent=1 // pred_check_branch
      %1875 = sbr.rel (0) target = $region29
    $region28: #{tpu_custom_call.1} parent=1 // pred_region
      %s1877 = ssub.s32 128, 128
      %1878 = vsyncadd [#allocation5], %s1877
      %s1880 = sshll.u32 [#allocation8], 4
      %s1881 = int_to_ptr.vmem [resolvable:$true] %s1880
      %1883 = dma.vmem_to_hbm [thread:$0]  %s1881, 128, %s4, [#allocation5]
    $region29: #{tpu_custom_call.1} parent=1 // pred_fallthru
      _
    // Predicated region
    $region30: #{tpu_custom_call.1} parent=1 // pred_check
      _
    $region31: #{tpu_custom_call.1} parent=1 // pred_check_branch
      %1885 = sbr.rel (0) target = $region33
    $region32: #{tpu_custom_call.1} parent=1 // pred_region
      %1886 = dma.done [#allocation5], 128
    $region33: #{tpu_custom_call.1} parent=1 // pred_fallthru
      _
    %1887 = vsyncpa [#allocation4], 1
    %1888 = vsyncpa [#allocation7], 1
    %1889 = vsyncpa [#allocation5], 1

</llo_original>
